<compile_context>
chip_gen: v7x
topology: tpu7x:2x2x1
jax: 0.10.0
libtpu: 0.0.40
codegen_flags: <defaults>
</compile_context>

<pallas_src>
import jax
import jax.numpy as jnp
from jax import lax
from jax.experimental import pallas as pl
from jax.experimental.pallas import tpu as pltpu

# ---- synthetic "small GPT" config (stand-in for gpt2-medium) ----
D_MODEL = 32
N_HEADS = 4
D_HEAD = D_MODEL // N_HEADS
D_MLP = 4 * D_MODEL
D_VOCAB = 64
N_LAYERS = 2
N_CTX = 8
EPS = 1e-5
NEG_INF = -1e30
MATMUL_DTYPE = jnp.bfloat16   # MXU-native operand dtype; accumulation stays float32


# ---------------- helpers usable both inside kernels and in the JAX reference ----------------
def _layernorm(x, w, b):
    mu = jnp.mean(x, axis=-1, keepdims=True)
    xc = x - mu
    var = jnp.mean(xc * xc, axis=-1, keepdims=True)
    return xc * lax.rsqrt(var + EPS) * w + b


def _gelu_new(x):
    # GPT-2 "gelu_new" (tanh approximation)
    return 0.5 * x * (1.0 + jnp.tanh(jnp.sqrt(2.0 / jnp.pi) * (x + 0.044715 * x * x * x)))


# ---------------- kernel 1: all transformer layers, residual resident in VMEM ----------------
def transformer_layers_kernel(
        resid_in_ref, bias_ref,
        lnb_ref, wqkv_ref, bqkv_ref, wo_ref, win_ref, bin_ref, wout_ref,
        resid_out_ref,
        resid_scr):
    layer = pl.program_id(1)
    n_layers = pl.num_programs(1)
    bt, seq, d_model = resid_in_ref.shape
    rows = bt * seq
    n_heads = N_HEADS
    d_head = d_model // n_heads

    # initialize the resident residual stream from the embedding output on the first layer step
    @pl.when(layer == 0)
    def _():
        resid_scr[...] = resid_in_ref[...].reshape(rows, d_model)

    x = resid_scr[...]                              # (rows, d_model) f32
    lnb = lnb_ref[0]                                # (6, d_model): ln1_w, ln1_b, ln2_w, ln2_b, b_O, b_out

    # ----- attention sublayer (pre-LN, causal, per-head softmax) -----
    xn = _layernorm(x, lnb[0:1], lnb[1:2])
    # fused QKV projection; 1/sqrt(d_head) already folded into the Q slice in the wrapper
    qkv = jnp.dot(xn.astype(MATMUL_DTYPE), wqkv_ref[0],
                  preferred_element_type=jnp.float32) + bqkv_ref[0]   # (rows, 3*d_model) f32
    q = qkv[:, 0 * d_model:1 * d_model].reshape(bt, seq, d_model)
    k = qkv[:, 1 * d_model:2 * d_model].reshape(bt, seq, d_model)
    v = qkv[:, 2 * d_model:3 * d_model].reshape(bt, seq, d_model)
    bias = bias_ref[...]                            # (seq, seq): 0 / NEG_INF causal bias

    z_heads = []
    for h in range(n_heads):                        # static per-head loop (unrolled at trace time)
        sl = slice(h * d_head, (h + 1) * d_head)
        qh = q[:, :, sl].astype(MATMUL_DTYPE)
        kh = k[:, :, sl].astype(MATMUL_DTYPE)
        vh = v[:, :, sl].astype(MATMUL_DTYPE)
        s = jnp.einsum('bqd,bkd->bqk', qh, kh,
                       preferred_element_type=jnp.float32) + bias     # (bt, seq, seq)
        m = jnp.max(s, axis=-1, keepdims=True)      # per-head max (XLU) — stable softmax
        e = jnp.exp(s - m)
        den = jnp.sum(e, axis=-1, keepdims=True)    # XLU lane reduce (no sum_blk matmul)
        p = e * pl.reciprocal(den, approx=True)
        z_heads.append(jnp.einsum('bqk,bkd->bqd', p.astype(MATMUL_DTYPE), vh,
                                  preferred_element_type=jnp.float32))
    z = jnp.concatenate(z_heads, axis=-1).reshape(rows, d_model)
    x = x + jnp.dot(z.astype(MATMUL_DTYPE), wo_ref[0],
                    preferred_element_type=jnp.float32) + lnb[4:5]

    # ----- MLP sublayer (pre-LN, gelu_new) -----
    xn2 = _layernorm(x, lnb[2:3], lnb[3:4])
    pre = jnp.dot(xn2.astype(MATMUL_DTYPE), win_ref[0],
                  preferred_element_type=jnp.float32) + bin_ref[0]
    x = x + jnp.dot(_gelu_new(pre).astype(MATMUL_DTYPE), wout_ref[0],
                    preferred_element_type=jnp.float32) + lnb[5:6]

    resid_scr[...] = x

    # write the final residual (post all layers) back to HBM once, on the last layer step
    @pl.when(layer == n_layers - 1)
    def _():
        resid_out_ref[...] = x.reshape(bt, seq, d_model)


# ---------------- kernel 2: final LayerNorm + unembedding + value head ----------------
def final_head_kernel(resid_ref, lnf_ref, wu_ref, bu_ref, wv1_ref, bv1_ref,
                      wv2row_ref, bv2_ref, logits_ref, values_ref):
    bt, seq, d_model = resid_ref.shape
    rows = bt * seq
    d_vocab = wu_ref.shape[1]

    x = resid_ref[...].reshape(rows, d_model)
    lnf = lnf_ref[...]                                              # (2, d_model)
    normalized = _layernorm(x, lnf[0:1], lnf[1:2])
    nrm = normalized.astype(MATMUL_DTYPE)

    # TODO(synk): at real vocab sizes this matmul should be tiled over a vocab grid axis.
    logits = jnp.dot(nrm, wu_ref[...], preferred_element_type=jnp.float32) + bu_ref[...]
    logits_ref[...] = logits.reshape(bt, seq, d_vocab)

    h = jnp.maximum(jnp.dot(nrm, wv1_ref[...],
                            preferred_element_type=jnp.float32) + bv1_ref[...], 0.0)
    # value head output via elementwise product + lane reduce (no h.T transpose, no N=1 matmul)
    vals = jnp.sum(h * wv2row_ref[...], axis=-1, keepdims=True) + bv2_ref[...]
    values_ref[...] = vals.reshape(bt, seq, 1)


# ---------------- wrapper ----------------
def _pick_batch_tile(batch, seq):
    # Keep >=2 parallel tiles when batch allows (v7x megacore) while targeting ~256 rows per tile.
    if batch < 2:
        return 1
    b_tile = max(1, min(batch // 2, max(1, 256 // seq)))
    while batch % b_tile:
        b_tile -= 1
    return b_tile


@jax.jit
def transformer_with_value_head_forward(input_ids, params):
    batch, seq = input_ids.shape
    # embedding gather is glue (plain JAX)
    resid0 = (params["W_E"][input_ids] + params["W_pos"][:seq][None, :, :]).astype(jnp.float32)
    n_layers = len(params["blocks"])
    b_tile = _pick_batch_tile(batch, seq)
    nb = batch // b_tile

    def stack(name):
        return jnp.stack([lp[name] for lp in params["blocks"]], axis=0)

    scale = 1.0 / jnp.sqrt(jnp.float32(D_HEAD))
    # fused QKV weight/bias (attention scale folded into the Q slice), bf16 matmul operands
    w_qkv = jnp.concatenate([stack("W_Q") * scale, stack("W_K"), stack("W_V")],
                            axis=-1).astype(MATMUL_DTYPE)            # (L, d_model, 3*d_model)
    b_qkv = jnp.concatenate([stack("b_Q") * scale, stack("b_K"), stack("b_V")],
                            axis=-1)                                  # (L, 1, 3*d_model) f32
    # LN params + d_model-wide biases packed into one array: fewer per-step DMAs
    lnb = jnp.concatenate([stack("ln1_w"), stack("ln1_b"), stack("ln2_w"), stack("ln2_b"),
                           stack("b_O"), stack("b_out")], axis=1)     # (L, 6, d_model) f32
    w_o = stack("W_O").astype(MATMUL_DTYPE)
    w_in = stack("W_in").astype(MATMUL_DTYPE)
    b_in = stack("b_in")
    w_out = stack("W_out").astype(MATMUL_DTYPE)
    layer_inputs = [lnb, w_qkv, b_qkv, w_o, w_in, b_in, w_out]

    # (seq, seq) additive causal bias, hoisted out of the kernel
    pos = jnp.arange(seq)
    causal_bias = jnp.where(pos[None, :] <= pos[:, None], 0.0, NEG_INF).astype(jnp.float32)

    def layer_spec(arr):
        nd = arr.ndim
        return pl.BlockSpec((1,) + arr.shape[1:],
                            lambda bi, li, _nd=nd: (li,) + (0,) * (_nd - 1))

    resid_final = pl.pallas_call(
        transformer_layers_kernel,
        out_shape=jax.ShapeDtypeStruct((batch, seq, D_MODEL), jnp.float32),
        grid=(nb, n_layers),
        in_specs=(
            [pl.BlockSpec((b_tile, seq, D_MODEL), lambda bi, li: (bi, 0, 0)),
             pl.BlockSpec((seq, seq), lambda bi, li: (0, 0))]
            + [layer_spec(a) for a in layer_inputs]),
        out_specs=pl.BlockSpec((b_tile, seq, D_MODEL), lambda bi, li: (bi, 0, 0)),
        scratch_shapes=[pltpu.VMEM((b_tile * seq, D_MODEL), jnp.float32)],
        compiler_params=pltpu.CompilerParams(
            dimension_semantics=("parallel", "arbitrary")),
    )(resid0, causal_bias, *layer_inputs)

    fp = params["final"]
    lnf = jnp.concatenate([fp["lnf_w"], fp["lnf_b"]], axis=0)         # (2, d_model)
    head_inputs = [lnf,
                   fp["W_U"].astype(MATMUL_DTYPE), fp["b_U"],
                   fp["W_v1"].astype(MATMUL_DTYPE), fp["b_v1"],
                   fp["W_v2"].T, fp["b_v2"]]                          # W_v2 as a (1, 4*d_model) row

    def const_spec(arr):
        nd = arr.ndim
        return pl.BlockSpec(arr.shape, lambda bi, _nd=nd: (0,) * _nd)

    logits, values = pl.pallas_call(
        final_head_kernel,
        out_shape=(jax.ShapeDtypeStruct((batch, seq, D_VOCAB), jnp.float32),
                   jax.ShapeDtypeStruct((batch, seq, 1), jnp.float32)),
        grid=(nb,),
        in_specs=(
            [pl.BlockSpec((b_tile, seq, D_MODEL), lambda bi: (bi, 0, 0))]
            + [const_spec(a) for a in head_inputs]),
        out_specs=(pl.BlockSpec((b_tile, seq, D_VOCAB), lambda bi: (bi, 0, 0)),
                   pl.BlockSpec((b_tile, seq, 1), lambda bi: (bi, 0, 0))),
        compiler_params=pltpu.CompilerParams(dimension_semantics=("parallel",)),
    )(resid_final, *head_inputs)

    return logits, jnp.squeeze(values, axis=-1)   # (batch, seq, d_vocab), (batch, seq)


# ---------------- deterministic parameter init ----------------
def init_params(key):
    std = 0.02

    def normal(key, shape):
        return std * jax.random.normal(key, shape, dtype=jnp.float32)

    keys = jax.random.split(key, 4 + N_LAYERS)
    params = {
        "W_E": normal(keys[0], (D_VOCAB, D_MODEL)),
        "W_pos": normal(keys[1], (N_CTX, D_MODEL)),
        "blocks": [],
    }
    for l in range(N_LAYERS):
        ks = jax.random.split(keys[4 + l], 6)
        params["blocks"].append({
            "ln1_w": jnp.ones((1, D_MODEL), jnp.float32),
            "ln1_b": jnp.zeros((1, D_MODEL), jnp.float32),
            "W_Q": normal(ks[0], (D_MODEL, D_MODEL)), "b_Q": jnp.zeros((1, D_MODEL), jnp.float32),
            "W_K": normal(ks[1], (D_MODEL, D_MODEL)), "b_K": jnp.zeros((1, D_MODEL), jnp.float32),
            "W_V": normal(ks[2], (D_MODEL, D_MODEL)), "b_V": jnp.zeros((1, D_MODEL), jnp.float32),
            "W_O": normal(ks[3], (D_MODEL, D_MODEL)), "b_O": jnp.zeros((1, D_MODEL), jnp.float32),
            "ln2_w": jnp.ones((1, D_MODEL), jnp.float32),
            "ln2_b": jnp.zeros((1, D_MODEL), jnp.float32),
            "W_in": normal(ks[4], (D_MODEL, D_MLP)), "b_in": jnp.zeros((1, D_MLP), jnp.float32),
            "W_out": normal(ks[5], (D_MLP, D_MODEL)), "b_out": jnp.zeros((1, D_MODEL), jnp.float32),
        })
    kf = jax.random.split(keys[2], 3)
    params["final"] = {
        "lnf_w": jnp.ones((1, D_MODEL), jnp.float32),
        "lnf_b": jnp.zeros((1, D_MODEL), jnp.float32),
        "W_U": normal(kf[0], (D_MODEL, D_VOCAB)), "b_U": jnp.zeros((1, D_VOCAB), jnp.float32),
        # value head: Linear(d_model, 4*d_model) -> ReLU -> Linear(4*d_model, 1), with biases
        "W_v1": normal(kf[1], (D_MODEL, 4 * D_MODEL)), "b_v1": jnp.zeros((1, 4 * D_MODEL), jnp.float32),
        "W_v2": normal(kf[2], (4 * D_MODEL, 1)), "b_v2": jnp.zeros((1, 1), jnp.float32),
    }
    return params


# ---------------- pure-JAX reference (same math, full f32, no Pallas) ----------------
def reference_forward(input_ids, params):
    batch, seq = input_ids.shape
    resid = params["W_E"][input_ids] + params["W_pos"][:seq][None, :, :]
    causal = jnp.tril(jnp.ones((seq, seq), bool))
    for lp in params["blocks"]:
        xn = _layernorm(resid, lp["ln1_w"], lp["ln1_b"])
        q = xn @ lp["W_Q"] + lp["b_Q"]
        k = xn @ lp["W_K"] + lp["b_K"]
        v = xn @ lp["W_V"] + lp["b_V"]
        q = q.reshape(batch, seq, N_HEADS, D_HEAD)
        k = k.reshape(batch, seq, N_HEADS, D_HEAD)
        v = v.reshape(batch, seq, N_HEADS, D_HEAD)
        scores = jnp.einsum("bqhd,bkhd->bhqk", q, k) / jnp.sqrt(jnp.float32(D_HEAD))
        scores = jnp.where(causal[None, None], scores, NEG_INF)
        p = jax.nn.softmax(scores, axis=-1)
        z = jnp.einsum("bhqk,bkhd->bqhd", p, v).reshape(batch, seq, D_MODEL)
        resid = resid + z @ lp["W_O"] + lp["b_O"]
        xn2 = _layernorm(resid, lp["ln2_w"], lp["ln2_b"])
        resid = resid + _gelu_new(xn2 @ lp["W_in"] + lp["b_in"]) @ lp["W_out"] + lp["b_out"]
    fp = params["final"]
    normalized = _layernorm(resid, fp["lnf_w"], fp["lnf_b"])
    logits = normalized @ fp["W_U"] + fp["b_U"]
    values = (jnp.maximum(normalized @ fp["W_v1"] + fp["b_v1"], 0.0) @ fp["W_v2"] + fp["b_v2"])
    return logits, jnp.squeeze(values, axis=-1)


if __name__ == "__main__":
    key = jax.random.PRNGKey(0)
    k_params, k_ids = jax.random.split(key)
    params = init_params(k_params)

    batch, seq = 2, 8
    input_ids = jax.random.randint(k_ids, (batch, seq), 0, D_VOCAB, dtype=jnp.int32)

    logits, values = transformer_with_value_head_forward(input_ids, params)
    logits, values = jax.block_until_ready((logits, values))

    assert logits.shape == (batch, seq, D_VOCAB)
    assert values.shape == (batch, seq)

    ref_logits, ref_values = reference_forward(input_ids, params)
    # tolerance accounts for bf16 matmul operands + pl.reciprocal(approx=True) in the softmax
    assert jnp.allclose(logits, ref_logits, atol=2e-2, rtol=2e-2)
    assert jnp.allclose(values, ref_values, atol=2e-2, rtol=2e-2)

    print("KERNEL_OK")
</pallas_src>

<mosaic_0001>
module attributes {stable_mosaic.version = 11 : i64} {
  func.func @transformer_layers_kernel(%arg0: i32, %arg1: i32, %arg2: memref<1x8x32xf32, #tpu.memory_space<vmem>>, %arg3: memref<8x8xf32, #tpu.memory_space<vmem>>, %arg4: memref<1x6x32xf32, #tpu.memory_space<vmem>>, %arg5: memref<1x32x96xbf16, #tpu.memory_space<vmem>>, %arg6: memref<1x1x96xf32, #tpu.memory_space<vmem>>, %arg7: memref<1x32x32xbf16, #tpu.memory_space<vmem>>, %arg8: memref<1x32x128xbf16, #tpu.memory_space<vmem>>, %arg9: memref<1x1x128xf32, #tpu.memory_space<vmem>>, %arg10: memref<1x128x32xbf16, #tpu.memory_space<vmem>>, %arg11: memref<1x8x32xf32, #tpu.memory_space<vmem>>, %arg12: memref<8x32xf32, #tpu.memory_space<vmem>>) attributes {dimension_semantics = [#tpu.dimension_semantics<parallel>, #tpu.dimension_semantics<arbitrary>], iteration_bounds = array<i64: 2, 2>, scalar_prefetch = 0 : i64, scratch_operands = 1 : i64, tpu.core_type = #tpu.core_type<tc>, window_params = [{transform_indices = @transform_0, window_bounds = array<i64: 1, 8, 32>}, {pipeline_mode = #tpu.pipeline_mode<synchronous>, transform_indices = @transform_1, window_bounds = array<i64: 8, 8>}, {transform_indices = @transform_2, window_bounds = array<i64: 1, 6, 32>}, {transform_indices = @transform_3, window_bounds = array<i64: 1, 32, 96>}, {transform_indices = @transform_4, window_bounds = array<i64: 1, 1, 96>}, {transform_indices = @transform_5, window_bounds = array<i64: 1, 32, 32>}, {transform_indices = @transform_6, window_bounds = array<i64: 1, 32, 128>}, {transform_indices = @transform_7, window_bounds = array<i64: 1, 1, 128>}, {transform_indices = @transform_8, window_bounds = array<i64: 1, 128, 32>}, {transform_indices = @transform_9, window_bounds = array<i64: 1, 8, 32>}]} {
    %c0_i32 = arith.constant 0 : i32
    %0 = arith.cmpi eq, %arg1, %c0_i32 : i32
    %1 = arith.extui %0 : i1 to i32
    %c0_i32_0 = arith.constant 0 : i32
    %2 = arith.cmpi ne, %1, %c0_i32_0 : i32
    scf.if %2 {
      %c0_61 = arith.constant 0 : index
      %c0_62 = arith.constant 0 : index
      %c0_63 = arith.constant 0 : index
      %193 = vector.load %arg2[%c0_61, %c0_62, %c0_63] : memref<1x8x32xf32, #tpu.memory_space<vmem>>, vector<1x8x32xf32>
      %194 = vector.shape_cast %193 : vector<1x8x32xf32> to vector<8x32xf32>
      %c0_64 = arith.constant 0 : index
      %c0_65 = arith.constant 0 : index
      %195 = vector.load %arg12[%c0_64, %c0_65] : memref<8x32xf32, #tpu.memory_space<vmem>>, vector<8x32xf32>
      tpu.vector_store %arg12[%c0_64, %c0_65], %194 {strides = array<i32>} : memref<8x32xf32, #tpu.memory_space<vmem>>, vector<8x32xf32>,
    } else {
    }
    %c0 = arith.constant 0 : index
    %c0_1 = arith.constant 0 : index
    %3 = vector.load %arg12[%c0, %c0_1] : memref<8x32xf32, #tpu.memory_space<vmem>>, vector<8x32xf32>
    %c0_2 = arith.constant 0 : index
    %c0_3 = arith.constant 0 : index
    %c0_4 = arith.constant 0 : index
    %4 = vector.load %arg4[%c0_2, %c0_3, %c0_4] : memref<1x6x32xf32, #tpu.memory_space<vmem>>, vector<1x6x32xf32>
    %5 = vector.shape_cast %4 : vector<1x6x32xf32> to vector<6x32xf32>
    %6 = vector.extract_strided_slice %5 {offsets = [0, 0], sizes = [1, 32], strides = [1, 1]} : vector<6x32xf32> to vector<1x32xf32>
    %7 = vector.extract_strided_slice %5 {offsets = [1, 0], sizes = [1, 32], strides = [1, 1]} : vector<6x32xf32> to vector<1x32xf32>
    %cst = arith.constant dense<0.000000e+00> : vector<8xf32>
    %8 = vector.multi_reduction <add>, %3, %cst [1] : vector<8x32xf32> to vector<8xf32>
    %9 = vector.shape_cast %8 : vector<8xf32> to vector<8x1xf32>
    %cst_5 = arith.constant 3.200000e+01 : f32
    %10 = vector.broadcast %cst_5 : f32 to vector<8x1xf32>
    %11 = arith.divf %9, %10 : vector<8x1xf32>
    %12 = vector.broadcast %11 : vector<8x1xf32> to vector<8x32xf32>
    %13 = arith.subf %3, %12 : vector<8x32xf32>
    %14 = arith.mulf %13, %13 : vector<8x32xf32>
    %cst_6 = arith.constant dense<0.000000e+00> : vector<8xf32>
    %15 = vector.multi_reduction <add>, %14, %cst_6 [1] : vector<8x32xf32> to vector<8xf32>
    %16 = vector.shape_cast %15 : vector<8xf32> to vector<8x1xf32>
    %cst_7 = arith.constant 3.200000e+01 : f32
    %17 = vector.broadcast %cst_7 : f32 to vector<8x1xf32>
    %18 = arith.divf %16, %17 : vector<8x1xf32>
    %cst_8 = arith.constant 9.99999974E-6 : f32
    %19 = vector.broadcast %cst_8 : f32 to vector<8x1xf32>
    %20 = arith.addf %18, %19 : vector<8x1xf32>
    %21 = math.rsqrt %20 : vector<8x1xf32>
    %22 = vector.broadcast %21 : vector<8x1xf32> to vector<8x32xf32>
    %23 = arith.mulf %13, %22 : vector<8x32xf32>
    %24 = vector.broadcast %6 : vector<1x32xf32> to vector<8x32xf32>
    %25 = arith.mulf %23, %24 : vector<8x32xf32>
    %26 = vector.broadcast %7 : vector<1x32xf32> to vector<8x32xf32>
    %27 = arith.addf %25, %26 : vector<8x32xf32>
    %28 = arith.truncf %27 : vector<8x32xf32> to vector<8x32xbf16>
    %c0_9 = arith.constant 0 : index
    %c0_10 = arith.constant 0 : index
    %c0_11 = arith.constant 0 : index
    %29 = vector.load %arg5[%c0_9, %c0_10, %c0_11] : memref<1x32x96xbf16, #tpu.memory_space<vmem>>, vector<1x32x96xbf16>
    %30 = vector.shape_cast %29 : vector<1x32x96xbf16> to vector<32x96xbf16>
    %cst_12 = arith.constant dense<0.000000e+00> : vector<8x96xf32>
    %31 = tpu.matmul %28, %30, %cst_12 {dimension_numbers = #tpu.dot_dimension_numbers<[1], [0], [0], [1], [0, 0, 1, 1], [], []>} : vector<8x32xbf16>, vector<32x96xbf16>, vector<8x96xf32> -> vector<8x96xf32>
    %c0_13 = arith.constant 0 : index
    %c0_14 = arith.constant 0 : index
    %c0_15 = arith.constant 0 : index
    %32 = vector.load %arg6[%c0_13, %c0_14, %c0_15] : memref<1x1x96xf32, #tpu.memory_space<vmem>>, vector<1x1x96xf32>
    %33 = vector.shape_cast %32 : vector<1x1x96xf32> to vector<1x96xf32>
    %34 = vector.broadcast %33 : vector<1x96xf32> to vector<8x96xf32>
    %35 = arith.addf %31, %34 : vector<8x96xf32>
    %36 = vector.extract_strided_slice %35 {offsets = [0, 0], sizes = [8, 32], strides = [1, 1]} : vector<8x96xf32> to vector<8x32xf32>
    %37 = vector.shape_cast %36 : vector<8x32xf32> to vector<1x8x32xf32>
    %38 = vector.extract_strided_slice %35 {offsets = [0, 32], sizes = [8, 32], strides = [1, 1]} : vector<8x96xf32> to vector<8x32xf32>
    %39 = vector.shape_cast %38 : vector<8x32xf32> to vector<1x8x32xf32>
    %40 = vector.extract_strided_slice %35 {offsets = [0, 64], sizes = [8, 32], strides = [1, 1]} : vector<8x96xf32> to vector<8x32xf32>
    %41 = vector.shape_cast %40 : vector<8x32xf32> to vector<1x8x32xf32>
    %c0_16 = arith.constant 0 : index
    %c0_17 = arith.constant 0 : index
    %42 = vector.load %arg3[%c0_16, %c0_17] : memref<8x8xf32, #tpu.memory_space<vmem>>, vector<8x8xf32>
    %43 = vector.extract_strided_slice %37 {offsets = [0, 0, 0], sizes = [1, 8, 8], strides = [1, 1, 1]} : vector<1x8x32xf32> to vector<1x8x8xf32>
    %44 = arith.truncf %43 : vector<1x8x8xf32> to vector<1x8x8xbf16>
    %45 = vector.extract_strided_slice %39 {offsets = [0, 0, 0], sizes = [1, 8, 8], strides = [1, 1, 1]} : vector<1x8x32xf32> to vector<1x8x8xf32>
    %46 = arith.truncf %45 : vector<1x8x8xf32> to vector<1x8x8xbf16>
    %47 = vector.extract_strided_slice %41 {offsets = [0, 0, 0], sizes = [1, 8, 8], strides = [1, 1, 1]} : vector<1x8x32xf32> to vector<1x8x8xf32>
    %48 = arith.truncf %47 : vector<1x8x8xf32> to vector<1x8x8xbf16>
    "tpu.trace_start"() <{level = 10 : i32, message = "bqd,bkd->bqk"}> : () -> ()
    %cst_18 = arith.constant dense<0.000000e+00> : vector<1x8x8xf32>
    %49 = tpu.matmul %44, %46, %cst_18 {dimension_numbers = #tpu.dot_dimension_numbers<[2], [2], [1], [1], [0, 0, 0, 1, 1, 1], [0], [0]>} : vector<1x8x8xbf16>, vector<1x8x8xbf16>, vector<1x8x8xf32> -> vector<1x8x8xf32>
    "tpu.trace_stop"() : () -> ()
    %50 = vector.shape_cast %42 : vector<8x8xf32> to vector<1x8x8xf32>
    %51 = arith.addf %49, %50 : vector<1x8x8xf32>
    %cst_19 = arith.constant dense<0xFF800000> : vector<1x8xf32>
    %52 = vector.multi_reduction <maximumf>, %51, %cst_19 [2] : vector<1x8x8xf32> to vector<1x8xf32>
    %53 = vector.shape_cast %52 : vector<1x8xf32> to vector<1x8x1xf32>
    %54 = vector.broadcast %53 : vector<1x8x1xf32> to vector<1x8x8xf32>
    %55 = arith.subf %51, %54 : vector<1x8x8xf32>
    %56 = math.exp %55 : vector<1x8x8xf32>
    %cst_20 = arith.constant dense<0.000000e+00> : vector<1x8xf32>
    %57 = vector.multi_reduction <add>, %56, %cst_20 [2] : vector<1x8x8xf32> to vector<1x8xf32>
    %58 = vector.shape_cast %57 : vector<1x8xf32> to vector<1x8x1xf32>
    %59 = tpu.reciprocal %58 {approx = true} : vector<1x8x1xf32> -> vector<1x8x1xf32>
    %60 = vector.broadcast %59 : vector<1x8x1xf32> to vector<1x8x8xf32>
    %61 = arith.mulf %56, %60 : vector<1x8x8xf32>
    %62 = arith.truncf %61 : vector<1x8x8xf32> to vector<1x8x8xbf16>
    "tpu.trace_start"() <{level = 10 : i32, message = "bqk,bkd->bqd"}> : () -> ()
    %cst_21 = arith.constant dense<0.000000e+00> : vector<1x8x8xf32>
    %63 = tpu.matmul %62, %48, %cst_21 {dimension_numbers = #tpu.dot_dimension_numbers<[2], [1], [1], [2], [0, 0, 0, 1, 1, 2], [0], [0]>} : vector<1x8x8xbf16>, vector<1x8x8xbf16>, vector<1x8x8xf32> -> vector<1x8x8xf32>
    "tpu.trace_stop"() : () -> ()
    %64 = vector.extract_strided_slice %37 {offsets = [0, 0, 8], sizes = [1, 8, 8], strides = [1, 1, 1]} : vector<1x8x32xf32> to vector<1x8x8xf32>
    %65 = arith.truncf %64 : vector<1x8x8xf32> to vector<1x8x8xbf16>
    %66 = vector.extract_strided_slice %39 {offsets = [0, 0, 8], sizes = [1, 8, 8], strides = [1, 1, 1]} : vector<1x8x32xf32> to vector<1x8x8xf32>
    %67 = arith.truncf %66 : vector<1x8x8xf32> to vector<1x8x8xbf16>
    %68 = vector.extract_strided_slice %41 {offsets = [0, 0, 8], sizes = [1, 8, 8], strides = [1, 1, 1]} : vector<1x8x32xf32> to vector<1x8x8xf32>
    %69 = arith.truncf %68 : vector<1x8x8xf32> to vector<1x8x8xbf16>
    "tpu.trace_start"() <{level = 10 : i32, message = "bqd,bkd->bqk"}> : () -> ()
    %cst_22 = arith.constant dense<0.000000e+00> : vector<1x8x8xf32>
    %70 = tpu.matmul %65, %67, %cst_22 {dimension_numbers = #tpu.dot_dimension_numbers<[2], [2], [1], [1], [0, 0, 0, 1, 1, 1], [0], [0]>} : vector<1x8x8xbf16>, vector<1x8x8xbf16>, vector<1x8x8xf32> -> vector<1x8x8xf32>
    "tpu.trace_stop"() : () -> ()
    %71 = vector.shape_cast %42 : vector<8x8xf32> to vector<1x8x8xf32>
    %72 = arith.addf %70, %71 : vector<1x8x8xf32>
    %cst_23 = arith.constant dense<0xFF800000> : vector<1x8xf32>
    %73 = vector.multi_reduction <maximumf>, %72, %cst_23 [2] : vector<1x8x8xf32> to vector<1x8xf32>
    %74 = vector.shape_cast %73 : vector<1x8xf32> to vector<1x8x1xf32>
    %75 = vector.broadcast %74 : vector<1x8x1xf32> to vector<1x8x8xf32>
    %76 = arith.subf %72, %75 : vector<1x8x8xf32>
    %77 = math.exp %76 : vector<1x8x8xf32>
    %cst_24 = arith.constant dense<0.000000e+00> : vector<1x8xf32>
    %78 = vector.multi_reduction <add>, %77, %cst_24 [2] : vector<1x8x8xf32> to vector<1x8xf32>
    %79 = vector.shape_cast %78 : vector<1x8xf32> to vector<1x8x1xf32>
    %80 = tpu.reciprocal %79 {approx = true} : vector<1x8x1xf32> -> vector<1x8x1xf32>
    %81 = vector.broadcast %80 : vector<1x8x1xf32> to vector<1x8x8xf32>
    %82 = arith.mulf %77, %81 : vector<1x8x8xf32>
    %83 = arith.truncf %82 : vector<1x8x8xf32> to vector<1x8x8xbf16>
    "tpu.trace_start"() <{level = 10 : i32, message = "bqk,bkd->bqd"}> : () -> ()
    %cst_25 = arith.constant dense<0.000000e+00> : vector<1x8x8xf32>
    %84 = tpu.matmul %83, %69, %cst_25 {dimension_numbers = #tpu.dot_dimension_numbers<[2], [1], [1], [2], [0, 0, 0, 1, 1, 2], [0], [0]>} : vector<1x8x8xbf16>, vector<1x8x8xbf16>, vector<1x8x8xf32> -> vector<1x8x8xf32>
    "tpu.trace_stop"() : () -> ()
    %85 = vector.extract_strided_slice %37 {offsets = [0, 0, 16], sizes = [1, 8, 8], strides = [1, 1, 1]} : vector<1x8x32xf32> to vector<1x8x8xf32>
    %86 = arith.truncf %85 : vector<1x8x8xf32> to vector<1x8x8xbf16>
    %87 = vector.extract_strided_slice %39 {offsets = [0, 0, 16], sizes = [1, 8, 8], strides = [1, 1, 1]} : vector<1x8x32xf32> to vector<1x8x8xf32>
    %88 = arith.truncf %87 : vector<1x8x8xf32> to vector<1x8x8xbf16>
    %89 = vector.extract_strided_slice %41 {offsets = [0, 0, 16], sizes = [1, 8, 8], strides = [1, 1, 1]} : vector<1x8x32xf32> to vector<1x8x8xf32>
    %90 = arith.truncf %89 : vector<1x8x8xf32> to vector<1x8x8xbf16>
    "tpu.trace_start"() <{level = 10 : i32, message = "bqd,bkd->bqk"}> : () -> ()
    %cst_26 = arith.constant dense<0.000000e+00> : vector<1x8x8xf32>
    %91 = tpu.matmul %86, %88, %cst_26 {dimension_numbers = #tpu.dot_dimension_numbers<[2], [2], [1], [1], [0, 0, 0, 1, 1, 1], [0], [0]>} : vector<1x8x8xbf16>, vector<1x8x8xbf16>, vector<1x8x8xf32> -> vector<1x8x8xf32>
    "tpu.trace_stop"() : () -> ()
    %92 = vector.shape_cast %42 : vector<8x8xf32> to vector<1x8x8xf32>
    %93 = arith.addf %91, %92 : vector<1x8x8xf32>
    %cst_27 = arith.constant dense<0xFF800000> : vector<1x8xf32>
    %94 = vector.multi_reduction <maximumf>, %93, %cst_27 [2] : vector<1x8x8xf32> to vector<1x8xf32>
    %95 = vector.shape_cast %94 : vector<1x8xf32> to vector<1x8x1xf32>
    %96 = vector.broadcast %95 : vector<1x8x1xf32> to vector<1x8x8xf32>
    %97 = arith.subf %93, %96 : vector<1x8x8xf32>
    %98 = math.exp %97 : vector<1x8x8xf32>
    %cst_28 = arith.constant dense<0.000000e+00> : vector<1x8xf32>
    %99 = vector.multi_reduction <add>, %98, %cst_28 [2] : vector<1x8x8xf32> to vector<1x8xf32>
    %100 = vector.shape_cast %99 : vector<1x8xf32> to vector<1x8x1xf32>
    %101 = tpu.reciprocal %100 {approx = true} : vector<1x8x1xf32> -> vector<1x8x1xf32>
    %102 = vector.broadcast %101 : vector<1x8x1xf32> to vector<1x8x8xf32>
    %103 = arith.mulf %98, %102 : vector<1x8x8xf32>
    %104 = arith.truncf %103 : vector<1x8x8xf32> to vector<1x8x8xbf16>
    "tpu.trace_start"() <{level = 10 : i32, message = "bqk,bkd->bqd"}> : () -> ()
    %cst_29 = arith.constant dense<0.000000e+00> : vector<1x8x8xf32>
    %105 = tpu.matmul %104, %90, %cst_29 {dimension_numbers = #tpu.dot_dimension_numbers<[2], [1], [1], [2], [0, 0, 0, 1, 1, 2], [0], [0]>} : vector<1x8x8xbf16>, vector<1x8x8xbf16>, vector<1x8x8xf32> -> vector<1x8x8xf32>
    "tpu.trace_stop"() : () -> ()
    %106 = vector.extract_strided_slice %37 {offsets = [0, 0, 24], sizes = [1, 8, 8], strides = [1, 1, 1]} : vector<1x8x32xf32> to vector<1x8x8xf32>
    %107 = arith.truncf %106 : vector<1x8x8xf32> to vector<1x8x8xbf16>
    %108 = vector.extract_strided_slice %39 {offsets = [0, 0, 24], sizes = [1, 8, 8], strides = [1, 1, 1]} : vector<1x8x32xf32> to vector<1x8x8xf32>
    %109 = arith.truncf %108 : vector<1x8x8xf32> to vector<1x8x8xbf16>
    %110 = vector.extract_strided_slice %41 {offsets = [0, 0, 24], sizes = [1, 8, 8], strides = [1, 1, 1]} : vector<1x8x32xf32> to vector<1x8x8xf32>
    %111 = arith.truncf %110 : vector<1x8x8xf32> to vector<1x8x8xbf16>
    "tpu.trace_start"() <{level = 10 : i32, message = "bqd,bkd->bqk"}> : () -> ()
    %cst_30 = arith.constant dense<0.000000e+00> : vector<1x8x8xf32>
    %112 = tpu.matmul %107, %109, %cst_30 {dimension_numbers = #tpu.dot_dimension_numbers<[2], [2], [1], [1], [0, 0, 0, 1, 1, 1], [0], [0]>} : vector<1x8x8xbf16>, vector<1x8x8xbf16>, vector<1x8x8xf32> -> vector<1x8x8xf32>
    "tpu.trace_stop"() : () -> ()
    %113 = vector.shape_cast %42 : vector<8x8xf32> to vector<1x8x8xf32>
    %114 = arith.addf %112, %113 : vector<1x8x8xf32>
    %cst_31 = arith.constant dense<0xFF800000> : vector<1x8xf32>
    %115 = vector.multi_reduction <maximumf>, %114, %cst_31 [2] : vector<1x8x8xf32> to vector<1x8xf32>
    %116 = vector.shape_cast %115 : vector<1x8xf32> to vector<1x8x1xf32>
    %117 = vector.broadcast %116 : vector<1x8x1xf32> to vector<1x8x8xf32>
    %118 = arith.subf %114, %117 : vector<1x8x8xf32>
    %119 = math.exp %118 : vector<1x8x8xf32>
    %cst_32 = arith.constant dense<0.000000e+00> : vector<1x8xf32>
    %120 = vector.multi_reduction <add>, %119, %cst_32 [2] : vector<1x8x8xf32> to vector<1x8xf32>
    %121 = vector.shape_cast %120 : vector<1x8xf32> to vector<1x8x1xf32>
    %122 = tpu.reciprocal %121 {approx = true} : vector<1x8x1xf32> -> vector<1x8x1xf32>
    %123 = vector.broadcast %122 : vector<1x8x1xf32> to vector<1x8x8xf32>
    %124 = arith.mulf %119, %123 : vector<1x8x8xf32>
    %125 = arith.truncf %124 : vector<1x8x8xf32> to vector<1x8x8xbf16>
    "tpu.trace_start"() <{level = 10 : i32, message = "bqk,bkd->bqd"}> : () -> ()
    %cst_33 = arith.constant dense<0.000000e+00> : vector<1x8x8xf32>
    %126 = tpu.matmul %125, %111, %cst_33 {dimension_numbers = #tpu.dot_dimension_numbers<[2], [1], [1], [2], [0, 0, 0, 1, 1, 2], [0], [0]>} : vector<1x8x8xbf16>, vector<1x8x8xbf16>, vector<1x8x8xf32> -> vector<1x8x8xf32>
    "tpu.trace_stop"() : () -> ()
    %127 = tpu.concatenate %63, %84, %105, %126 in 2 : vector<1x8x8xf32>, vector<1x8x8xf32>, vector<1x8x8xf32>, vector<1x8x8xf32> -> vector<1x8x32xf32>
    %128 = vector.shape_cast %127 : vector<1x8x32xf32> to vector<8x32xf32>
    %129 = arith.truncf %128 : vector<8x32xf32> to vector<8x32xbf16>
    %c0_34 = arith.constant 0 : index
    %c0_35 = arith.constant 0 : index
    %c0_36 = arith.constant 0 : index
    %130 = vector.load %arg7[%c0_34, %c0_35, %c0_36] : memref<1x32x32xbf16, #tpu.memory_space<vmem>>, vector<1x32x32xbf16>
    %131 = vector.shape_cast %130 : vector<1x32x32xbf16> to vector<32x32xbf16>
    %cst_37 = arith.constant dense<0.000000e+00> : vector<8x32xf32>
    %132 = tpu.matmul %129, %131, %cst_37 {dimension_numbers = #tpu.dot_dimension_numbers<[1], [0], [0], [1], [0, 0, 1, 1], [], []>} : vector<8x32xbf16>, vector<32x32xbf16>, vector<8x32xf32> -> vector<8x32xf32>
    %133 = arith.addf %3, %132 : vector<8x32xf32>
    %134 = vector.extract_strided_slice %5 {offsets = [4, 0], sizes = [1, 32], strides = [1, 1]} : vector<6x32xf32> to vector<1x32xf32>
    %135 = vector.broadcast %134 : vector<1x32xf32> to vector<8x32xf32>
    %136 = arith.addf %133, %135 : vector<8x32xf32>
    %137 = vector.extract_strided_slice %5 {offsets = [2, 0], sizes = [1, 32], strides = [1, 1]} : vector<6x32xf32> to vector<1x32xf32>
    %138 = vector.extract_strided_slice %5 {offsets = [3, 0], sizes = [1, 32], strides = [1, 1]} : vector<6x32xf32> to vector<1x32xf32>
    %cst_38 = arith.constant dense<0.000000e+00> : vector<8xf32>
    %139 = vector.multi_reduction <add>, %136, %cst_38 [1] : vector<8x32xf32> to vector<8xf32>
    %140 = vector.shape_cast %139 : vector<8xf32> to vector<8x1xf32>
    %cst_39 = arith.constant 3.200000e+01 : f32
    %141 = vector.broadcast %cst_39 : f32 to vector<8x1xf32>
    %142 = arith.divf %140, %141 : vector<8x1xf32>
    %143 = vector.broadcast %142 : vector<8x1xf32> to vector<8x32xf32>
    %144 = arith.subf %136, %143 : vector<8x32xf32>
    %145 = arith.mulf %144, %144 : vector<8x32xf32>
    %cst_40 = arith.constant dense<0.000000e+00> : vector<8xf32>
    %146 = vector.multi_reduction <add>, %145, %cst_40 [1] : vector<8x32xf32> to vector<8xf32>
    %147 = vector.shape_cast %146 : vector<8xf32> to vector<8x1xf32>
    %cst_41 = arith.constant 3.200000e+01 : f32
    %148 = vector.broadcast %cst_41 : f32 to vector<8x1xf32>
    %149 = arith.divf %147, %148 : vector<8x1xf32>
    %cst_42 = arith.constant 9.99999974E-6 : f32
    %150 = vector.broadcast %cst_42 : f32 to vector<8x1xf32>
    %151 = arith.addf %149, %150 : vector<8x1xf32>
    %152 = math.rsqrt %151 : vector<8x1xf32>
    %153 = vector.broadcast %152 : vector<8x1xf32> to vector<8x32xf32>
    %154 = arith.mulf %144, %153 : vector<8x32xf32>
    %155 = vector.broadcast %137 : vector<1x32xf32> to vector<8x32xf32>
    %156 = arith.mulf %154, %155 : vector<8x32xf32>
    %157 = vector.broadcast %138 : vector<1x32xf32> to vector<8x32xf32>
    %158 = arith.addf %156, %157 : vector<8x32xf32>
    %159 = arith.truncf %158 : vector<8x32xf32> to vector<8x32xbf16>
    %c0_43 = arith.constant 0 : index
    %c0_44 = arith.constant 0 : index
    %c0_45 = arith.constant 0 : index
    %160 = vector.load %arg8[%c0_43, %c0_44, %c0_45] : memref<1x32x128xbf16, #tpu.memory_space<vmem>>, vector<1x32x128xbf16>
    %161 = vector.shape_cast %160 : vector<1x32x128xbf16> to vector<32x128xbf16>
    %cst_46 = arith.constant dense<0.000000e+00> : vector<8x128xf32>
    %162 = tpu.matmul %159, %161, %cst_46 {dimension_numbers = #tpu.dot_dimension_numbers<[1], [0], [0], [1], [0, 0, 1, 1], [], []>} : vector<8x32xbf16>, vector<32x128xbf16>, vector<8x128xf32> -> vector<8x128xf32>
    %c0_47 = arith.constant 0 : index
    %c0_48 = arith.constant 0 : index
    %c0_49 = arith.constant 0 : index
    %163 = vector.load %arg9[%c0_47, %c0_48, %c0_49] : memref<1x1x128xf32, #tpu.memory_space<vmem>>, vector<1x1x128xf32>
    %164 = vector.shape_cast %163 : vector<1x1x128xf32> to vector<1x128xf32>
    %165 = vector.broadcast %164 : vector<1x128xf32> to vector<8x128xf32>
    %166 = arith.addf %162, %165 : vector<8x128xf32>
    %cst_50 = arith.constant 5.000000e-01 : f32
    %167 = vector.broadcast %cst_50 : f32 to vector<8x128xf32>
    %168 = arith.mulf %167, %166 : vector<8x128xf32>
    %cst_51 = arith.constant 0.636619746 : f32
    %169 = math.sqrt %cst_51 : f32
    %cst_52 = arith.constant 4.471500e-02 : f32
    %170 = vector.broadcast %cst_52 : f32 to vector<8x128xf32>
    %171 = arith.mulf %170, %166 : vector<8x128xf32>
    %172 = arith.mulf %171, %166 : vector<8x128xf32>
    %173 = arith.mulf %172, %166 : vector<8x128xf32>
    %174 = arith.addf %166, %173 : vector<8x128xf32>
    %175 = vector.broadcast %169 : f32 to vector<8x128xf32>
    %176 = arith.mulf %175, %174 : vector<8x128xf32>
    %177 = math.tanh %176 : vector<8x128xf32>
    %cst_53 = arith.constant 1.000000e+00 : f32
    %178 = vector.broadcast %cst_53 : f32 to vector<8x128xf32>
    %179 = arith.addf %178, %177 : vector<8x128xf32>
    %180 = arith.mulf %168, %179 : vector<8x128xf32>
    %181 = arith.truncf %180 : vector<8x128xf32> to vector<8x128xbf16>
    %c0_54 = arith.constant 0 : index
    %c0_55 = arith.constant 0 : index
    %c0_56 = arith.constant 0 : index
    %182 = vector.load %arg10[%c0_54, %c0_55, %c0_56] : memref<1x128x32xbf16, #tpu.memory_space<vmem>>, vector<1x128x32xbf16>
    %183 = vector.shape_cast %182 : vector<1x128x32xbf16> to vector<128x32xbf16>
    %cst_57 = arith.constant dense<0.000000e+00> : vector<8x32xf32>
    %184 = tpu.matmul %181, %183, %cst_57 {dimension_numbers = #tpu.dot_dimension_numbers<[1], [0], [0], [1], [0, 0, 1, 1], [], []>} : vector<8x128xbf16>, vector<128x32xbf16>, vector<8x32xf32> -> vector<8x32xf32>
    %185 = arith.addf %136, %184 : vector<8x32xf32>
    %186 = vector.extract_strided_slice %5 {offsets = [5, 0], sizes = [1, 32], strides = [1, 1]} : vector<6x32xf32> to vector<1x32xf32>
    %187 = vector.broadcast %186 : vector<1x32xf32> to vector<8x32xf32>
    %188 = arith.addf %185, %187 : vector<8x32xf32>
    %c0_58 = arith.constant 0 : index
    %c0_59 = arith.constant 0 : index
    %189 = vector.load %arg12[%c0_58, %c0_59] : memref<8x32xf32, #tpu.memory_space<vmem>>, vector<8x32xf32>
    tpu.vector_store %arg12[%c0_58, %c0_59], %188 {strides = array<i32>} : memref<8x32xf32, #tpu.memory_space<vmem>>, vector<8x32xf32>,
    %c1_i32 = arith.constant 1 : i32
    %190 = arith.cmpi eq, %arg1, %c1_i32 : i32
    %191 = arith.extui %190 : i1 to i32
    %c0_i32_60 = arith.constant 0 : i32
    %192 = arith.cmpi ne, %191, %c0_i32_60 : i32
    scf.if %192 {
      %193 = vector.shape_cast %188 : vector<8x32xf32> to vector<1x8x32xf32>
      %c0_61 = arith.constant 0 : index
      %c0_62 = arith.constant 0 : index
      %c0_63 = arith.constant 0 : index
      %194 = vector.load %arg11[%c0_61, %c0_62, %c0_63] : memref<1x8x32xf32, #tpu.memory_space<vmem>>, vector<1x8x32xf32>
      tpu.vector_store %arg11[%c0_61, %c0_62, %c0_63], %193 {strides = array<i32>} : memref<1x8x32xf32, #tpu.memory_space<vmem>>, vector<1x8x32xf32>,
    } else {
    }
    return
  }
  func.func @transform_0(%arg0: i32, %arg1: i32) -> (i32, i32, i32) {
    %c0_i32 = arith.constant 0 : i32
    %c0_i32_0 = arith.constant 0 : i32
    %c0_i32_1 = arith.constant 0 : i32
    return %arg0, %c0_i32, %c0_i32_0 : i32, i32, i32
  }
  func.func @transform_1(%arg0: i32, %arg1: i32) -> (i32, i32) {
    %c0_i32 = arith.constant 0 : i32
    %c0_i32_0 = arith.constant 0 : i32
    %c0_i32_1 = arith.constant 0 : i32
    return %c0_i32, %c0_i32_0 : i32, i32
  }
  func.func @transform_2(%arg0: i32, %arg1: i32) -> (i32, i32, i32) {
    %c0_i32 = arith.constant 0 : i32
    %c0_i32_0 = arith.constant 0 : i32
    %c0_i32_1 = arith.constant 0 : i32
    return %arg1, %c0_i32, %c0_i32_0 : i32, i32, i32
  }
  func.func @transform_3(%arg0: i32, %arg1: i32) -> (i32, i32, i32) {
    %c0_i32 = arith.constant 0 : i32
    %c0_i32_0 = arith.constant 0 : i32
    %c0_i32_1 = arith.constant 0 : i32
    return %arg1, %c0_i32, %c0_i32_0 : i32, i32, i32
  }
  func.func @transform_4(%arg0: i32, %arg1: i32) -> (i32, i32, i32) {
    %c0_i32 = arith.constant 0 : i32
    %c0_i32_0 = arith.constant 0 : i32
    %c0_i32_1 = arith.constant 0 : i32
    return %arg1, %c0_i32, %c0_i32_0 : i32, i32, i32
  }
  func.func @transform_5(%arg0: i32, %arg1: i32) -> (i32, i32, i32) {
    %c0_i32 = arith.constant 0 : i32
    %c0_i32_0 = arith.constant 0 : i32
    %c0_i32_1 = arith.constant 0 : i32
    return %arg1, %c0_i32, %c0_i32_0 : i32, i32, i32
  }
  func.func @transform_6(%arg0: i32, %arg1: i32) -> (i32, i32, i32) {
    %c0_i32 = arith.constant 0 : i32
    %c0_i32_0 = arith.constant 0 : i32
    %c0_i32_1 = arith.constant 0 : i32
    return %arg1, %c0_i32, %c0_i32_0 : i32, i32, i32
  }
  func.func @transform_7(%arg0: i32, %arg1: i32) -> (i32, i32, i32) {
    %c0_i32 = arith.constant 0 : i32
    %c0_i32_0 = arith.constant 0 : i32
    %c0_i32_1 = arith.constant 0 : i32
    return %arg1, %c0_i32, %c0_i32_0 : i32, i32, i32
  }
  func.func @transform_8(%arg0: i32, %arg1: i32) -> (i32, i32, i32) {
    %c0_i32 = arith.constant 0 : i32
    %c0_i32_0 = arith.constant 0 : i32
    %c0_i32_1 = arith.constant 0 : i32
    return %arg1, %c0_i32, %c0_i32_0 : i32, i32, i32
  }
  func.func @transform_9(%arg0: i32, %arg1: i32) -> (i32, i32, i32) {
    %c0_i32 = arith.constant 0 : i32
    %c0_i32_0 = arith.constant 0 : i32
    %c0_i32_1 = arith.constant 0 : i32
    return %arg0, %c0_i32, %c0_i32_0 : i32, i32, i32
  }
}

module attributes {stable_mosaic.version = 11 : i64} {
  func.func @final_head_kernel(%arg0: i32, %arg1: memref<1x8x32xf32, #tpu.memory_space<vmem>>, %arg2: memref<2x32xf32, #tpu.memory_space<vmem>>, %arg3: memref<32x64xbf16, #tpu.memory_space<vmem>>, %arg4: memref<1x64xf32, #tpu.memory_space<vmem>>, %arg5: memref<32x128xbf16, #tpu.memory_space<vmem>>, %arg6: memref<1x128xf32, #tpu.memory_space<vmem>>, %arg7: memref<1x128xf32, #tpu.memory_space<vmem>>, %arg8: memref<1x1xf32, #tpu.memory_space<vmem>>, %arg9: memref<1x8x64xf32, #tpu.memory_space<vmem>>, %arg10: memref<1x8x1xf32, #tpu.memory_space<vmem>>) attributes {dimension_semantics = [#tpu.dimension_semantics<parallel>], iteration_bounds = array<i64: 2>, scalar_prefetch = 0 : i64, scratch_operands = 0 : i64, tpu.core_type = #tpu.core_type<tc>, window_params = [{transform_indices = @transform_0, window_bounds = array<i64: 1, 8, 32>}, {pipeline_mode = #tpu.pipeline_mode<synchronous>, transform_indices = @transform_1, window_bounds = array<i64: 2, 32>}, {pipeline_mode = #tpu.pipeline_mode<synchronous>, transform_indices = @transform_2, window_bounds = array<i64: 32, 64>}, {pipeline_mode = #tpu.pipeline_mode<synchronous>, transform_indices = @transform_3, window_bounds = array<i64: 1, 64>}, {pipeline_mode = #tpu.pipeline_mode<synchronous>, transform_indices = @transform_4, window_bounds = array<i64: 32, 128>}, {pipeline_mode = #tpu.pipeline_mode<synchronous>, transform_indices = @transform_5, window_bounds = array<i64: 1, 128>}, {pipeline_mode = #tpu.pipeline_mode<synchronous>, transform_indices = @transform_6, window_bounds = array<i64: 1, 128>}, {pipeline_mode = #tpu.pipeline_mode<synchronous>, transform_indices = @transform_7, window_bounds = array<i64: 1, 1>}, {transform_indices = @transform_8, window_bounds = array<i64: 1, 8, 64>}, {transform_indices = @transform_9, window_bounds = array<i64: 1, 8, 1>}]} {
    %c0 = arith.constant 0 : index
    %c0_0 = arith.constant 0 : index
    %c0_1 = arith.constant 0 : index
    %0 = vector.load %arg1[%c0, %c0_0, %c0_1] : memref<1x8x32xf32, #tpu.memory_space<vmem>>, vector<1x8x32xf32>
    %1 = vector.shape_cast %0 : vector<1x8x32xf32> to vector<8x32xf32>
    %c0_2 = arith.constant 0 : index
    %c0_3 = arith.constant 0 : index
    %2 = vector.load %arg2[%c0_2, %c0_3] : memref<2x32xf32, #tpu.memory_space<vmem>>, vector<2x32xf32>
    %3 = vector.extract_strided_slice %2 {offsets = [0, 0], sizes = [1, 32], strides = [1, 1]} : vector<2x32xf32> to vector<1x32xf32>
    %4 = vector.extract_strided_slice %2 {offsets = [1, 0], sizes = [1, 32], strides = [1, 1]} : vector<2x32xf32> to vector<1x32xf32>
    %cst = arith.constant dense<0.000000e+00> : vector<8xf32>
    %5 = vector.multi_reduction <add>, %1, %cst [1] : vector<8x32xf32> to vector<8xf32>
    %6 = vector.shape_cast %5 : vector<8xf32> to vector<8x1xf32>
    %cst_4 = arith.constant 3.200000e+01 : f32
    %7 = vector.broadcast %cst_4 : f32 to vector<8x1xf32>
    %8 = arith.divf %6, %7 : vector<8x1xf32>
    %9 = vector.broadcast %8 : vector<8x1xf32> to vector<8x32xf32>
    %10 = arith.subf %1, %9 : vector<8x32xf32>
    %11 = arith.mulf %10, %10 : vector<8x32xf32>
    %cst_5 = arith.constant dense<0.000000e+00> : vector<8xf32>
    %12 = vector.multi_reduction <add>, %11, %cst_5 [1] : vector<8x32xf32> to vector<8xf32>
    %13 = vector.shape_cast %12 : vector<8xf32> to vector<8x1xf32>
    %cst_6 = arith.constant 3.200000e+01 : f32
    %14 = vector.broadcast %cst_6 : f32 to vector<8x1xf32>
    %15 = arith.divf %13, %14 : vector<8x1xf32>
    %cst_7 = arith.constant 9.99999974E-6 : f32
    %16 = vector.broadcast %cst_7 : f32 to vector<8x1xf32>
    %17 = arith.addf %15, %16 : vector<8x1xf32>
    %18 = math.rsqrt %17 : vector<8x1xf32>
    %19 = vector.broadcast %18 : vector<8x1xf32> to vector<8x32xf32>
    %20 = arith.mulf %10, %19 : vector<8x32xf32>
    %21 = vector.broadcast %3 : vector<1x32xf32> to vector<8x32xf32>
    %22 = arith.mulf %20, %21 : vector<8x32xf32>
    %23 = vector.broadcast %4 : vector<1x32xf32> to vector<8x32xf32>
    %24 = arith.addf %22, %23 : vector<8x32xf32>
    %25 = arith.truncf %24 : vector<8x32xf32> to vector<8x32xbf16>
    %c0_8 = arith.constant 0 : index
    %c0_9 = arith.constant 0 : index
    %26 = vector.load %arg3[%c0_8, %c0_9] : memref<32x64xbf16, #tpu.memory_space<vmem>>, vector<32x64xbf16>
    %cst_10 = arith.constant dense<0.000000e+00> : vector<8x64xf32>
    %27 = tpu.matmul %25, %26, %cst_10 {dimension_numbers = #tpu.dot_dimension_numbers<[1], [0], [0], [1], [0, 0, 1, 1], [], []>} : vector<8x32xbf16>, vector<32x64xbf16>, vector<8x64xf32> -> vector<8x64xf32>
    %c0_11 = arith.constant 0 : index
    %c0_12 = arith.constant 0 : index
    %28 = vector.load %arg4[%c0_11, %c0_12] : memref<1x64xf32, #tpu.memory_space<vmem>>, vector<1x64xf32>
    %29 = vector.broadcast %28 : vector<1x64xf32> to vector<8x64xf32>
    %30 = arith.addf %27, %29 : vector<8x64xf32>
    %31 = vector.shape_cast %30 : vector<8x64xf32> to vector<1x8x64xf32>
    %c0_13 = arith.constant 0 : index
    %c0_14 = arith.constant 0 : index
    %c0_15 = arith.constant 0 : index
    %32 = vector.load %arg9[%c0_13, %c0_14, %c0_15] : memref<1x8x64xf32, #tpu.memory_space<vmem>>, vector<1x8x64xf32>
    tpu.vector_store %arg9[%c0_13, %c0_14, %c0_15], %31 {strides = array<i32>} : memref<1x8x64xf32, #tpu.memory_space<vmem>>, vector<1x8x64xf32>,
    %c0_16 = arith.constant 0 : index
    %c0_17 = arith.constant 0 : index
    %33 = vector.load %arg5[%c0_16, %c0_17] : memref<32x128xbf16, #tpu.memory_space<vmem>>, vector<32x128xbf16>
    %cst_18 = arith.constant dense<0.000000e+00> : vector<8x128xf32>
    %34 = tpu.matmul %25, %33, %cst_18 {dimension_numbers = #tpu.dot_dimension_numbers<[1], [0], [0], [1], [0, 0, 1, 1], [], []>} : vector<8x32xbf16>, vector<32x128xbf16>, vector<8x128xf32> -> vector<8x128xf32>
    %c0_19 = arith.constant 0 : index
    %c0_20 = arith.constant 0 : index
    %35 = vector.load %arg6[%c0_19, %c0_20] : memref<1x128xf32, #tpu.memory_space<vmem>>, vector<1x128xf32>
    %36 = vector.broadcast %35 : vector<1x128xf32> to vector<8x128xf32>
    %37 = arith.addf %34, %36 : vector<8x128xf32>
    %cst_21 = arith.constant 0.000000e+00 : f32
    %38 = vector.broadcast %cst_21 : f32 to vector<8x128xf32>
    %39 = arith.maximumf %37, %38 : vector<8x128xf32>
    %c0_22 = arith.constant 0 : index
    %c0_23 = arith.constant 0 : index
    %40 = vector.load %arg7[%c0_22, %c0_23] : memref<1x128xf32, #tpu.memory_space<vmem>>, vector<1x128xf32>
    %41 = vector.broadcast %40 : vector<1x128xf32> to vector<8x128xf32>
    %42 = arith.mulf %39, %41 : vector<8x128xf32>
    %cst_24 = arith.constant dense<0.000000e+00> : vector<8xf32>
    %43 = vector.multi_reduction <add>, %42, %cst_24 [1] : vector<8x128xf32> to vector<8xf32>
    %44 = vector.shape_cast %43 : vector<8xf32> to vector<8x1xf32>
    %c0_25 = arith.constant 0 : index
    %c0_26 = arith.constant 0 : index
    %45 = vector.load %arg8[%c0_25, %c0_26] : memref<1x1xf32, #tpu.memory_space<vmem>>, vector<1x1xf32>
    %46 = vector.broadcast %45 : vector<1x1xf32> to vector<8x1xf32>
    %47 = arith.addf %44, %46 : vector<8x1xf32>
    %48 = vector.shape_cast %47 : vector<8x1xf32> to vector<1x8x1xf32>
    %c0_27 = arith.constant 0 : index
    %c0_28 = arith.constant 0 : index
    %c0_29 = arith.constant 0 : index
    %49 = vector.load %arg10[%c0_27, %c0_28, %c0_29] : memref<1x8x1xf32, #tpu.memory_space<vmem>>, vector<1x8x1xf32>
    tpu.vector_store %arg10[%c0_27, %c0_28, %c0_29], %48 {strides = array<i32>} : memref<1x8x1xf32, #tpu.memory_space<vmem>>, vector<1x8x1xf32>,
    return
  }
  func.func @transform_0(%arg0: i32) -> (i32, i32, i32) {
    %c0_i32 = arith.constant 0 : i32
    %c0_i32_0 = arith.constant 0 : i32
    %c0_i32_1 = arith.constant 0 : i32
    return %arg0, %c0_i32, %c0_i32_0 : i32, i32, i32
  }
  func.func @transform_1(%arg0: i32) -> (i32, i32) {
    %c0_i32 = arith.constant 0 : i32
    %c0_i32_0 = arith.constant 0 : i32
    %c0_i32_1 = arith.constant 0 : i32
    return %c0_i32, %c0_i32_0 : i32, i32
  }
  func.func @transform_2(%arg0: i32) -> (i32, i32) {
    %c0_i32 = arith.constant 0 : i32
    %c0_i32_0 = arith.constant 0 : i32
    %c0_i32_1 = arith.constant 0 : i32
    return %c0_i32, %c0_i32_0 : i32, i32
  }
  func.func @transform_3(%arg0: i32) -> (i32, i32) {
    %c0_i32 = arith.constant 0 : i32
    %c0_i32_0 = arith.constant 0 : i32
    %c0_i32_1 = arith.constant 0 : i32
    return %c0_i32, %c0_i32_0 : i32, i32
  }
  func.func @transform_4(%arg0: i32) -> (i32, i32) {
    %c0_i32 = arith.constant 0 : i32
    %c0_i32_0 = arith.constant 0 : i32
    %c0_i32_1 = arith.constant 0 : i32
    return %c0_i32, %c0_i32_0 : i32, i32
  }
  func.func @transform_5(%arg0: i32) -> (i32, i32) {
    %c0_i32 = arith.constant 0 : i32
    %c0_i32_0 = arith.constant 0 : i32
    %c0_i32_1 = arith.constant 0 : i32
    return %c0_i32, %c0_i32_0 : i32, i32
  }
  func.func @transform_6(%arg0: i32) -> (i32, i32) {
    %c0_i32 = arith.constant 0 : i32
    %c0_i32_0 = arith.constant 0 : i32
    %c0_i32_1 = arith.constant 0 : i32
    return %c0_i32, %c0_i32_0 : i32, i32
  }
  func.func @transform_7(%arg0: i32) -> (i32, i32) {
    %c0_i32 = arith.constant 0 : i32
    %c0_i32_0 = arith.constant 0 : i32
    %c0_i32_1 = arith.constant 0 : i32
    return %c0_i32, %c0_i32_0 : i32, i32
  }
  func.func @transform_8(%arg0: i32) -> (i32, i32, i32) {
    %c0_i32 = arith.constant 0 : i32
    %c0_i32_0 = arith.constant 0 : i32
    %c0_i32_1 = arith.constant 0 : i32
    return %arg0, %c0_i32, %c0_i32_0 : i32, i32, i32
  }
  func.func @transform_9(%arg0: i32) -> (i32, i32, i32) {
    %c0_i32 = arith.constant 0 : i32
    %c0_i32_0 = arith.constant 0 : i32
    %c0_i32_1 = arith.constant 0 : i32
    return %arg0, %c0_i32, %c0_i32_0 : i32, i32, i32
  }
}

</mosaic_0001>

<llo_original>
// kernel: transformer_with_value_head_forward.3
$region0: #{transformer_with_value_head_forward.3}
  #allocation0 [shape = 'u32[]', space=smem, size = 0x4, offset = 0x4, fixed_abs, tag = 'smem constant byte address 0x4 - core index']
  #allocation1 [shape = 'u32[144,128]{1,0:T(1,128)}', space=vmem, size = 0x12000, scoped, tag = 'internal scratch']
  #allocation2 [shape = 'f32[1,1]{1,0:T(1,128)S(1)}', space=vmem, size = 0x200, scoped, tag = 'scoped memory for transformer_with_value_head_forward.3']
  %s0 = inlined_call_operand.vmem [shape: f32[2,8,32], index: 0, kind: input, shape index: {}]
  %s1 = inlined_call_operand.vmem [shape: f32[2,32], index: 1, kind: input, shape index: {}]
  %s2 = inlined_call_operand.vmem [shape: bf16[32,64], index: 2, kind: input, shape index: {}]
  %s3 = inlined_call_operand.vmem [shape: f32[1,64], index: 3, kind: input, shape index: {}]
  %s4 = inlined_call_operand.vmem [shape: bf16[32,128], index: 4, kind: input, shape index: {}]
  %s5 = inlined_call_operand.vmem [shape: f32[1,128], index: 5, kind: input, shape index: {}]
  %s6 = inlined_call_operand.vmem [shape: f32[1,128], index: 6, kind: input, shape index: {}]
  %s7 = inlined_call_operand.<no memory space> [shape: f32[1,1], index: 7, kind: input, shape index: {}]
  %s8 = inlined_call_operand.hbm [shape: f32[2,8,64], index: 8, kind: output, shape index: {0}]
  %s9 = inlined_call_operand.vmem [shape: f32[2,8,1], index: 9, kind: output, shape index: {1}]
  %10 = xla_tuple %s8, %s9
  %s11 = sld [smem:[#allocation0]]
  $region73: #{transformer_with_value_head_forward.3} parent=0
    _
  %s13 = ssub.s32 1, %s11
  %s14 = scalar_select 0, %s13, %s11
  %v15 = vstv %s7
  %16 = vst [vmem:[#allocation2] sm:$0x1] %v15
  $region1: #{transformer_with_value_head_forward.3} parent=0
    #allocation3 [shape = 'u8[8192]{0}', space=vmem, size = 0x2000, scoped, tag = 'output window, operand 0']
    #allocation4 [shape = 's32[2]{0}', space=sflag, size = 0x8, scoped, tag = 'scoped memory for transformer_with_value_head_forward.3']
    %17 = vsyncpa [#allocation4], 0
    %s18 = scalar_lea.sflag [#allocation4], 1
    %19 = vsyncpa %s18, 0
    loop: start=0, step=1, limit=4
    $region2: #{transformer_with_value_head_forward.3} parent=1 // loop_pre_header
      _
    $region3: #{transformer_with_value_head_forward.3} parent=1 // loop_header
      %s21 = sphi 0, %s25
      %p22 = scmp.ge.s32.totalorder %s21, 4
      %s31 = sphi 0, %s33
      %s34 = sphi 0, %s31
      %s35 = sphi 0, %s34
      %s51 = sphi 0, %s35
      %s55 = sphi 0, %s55
      %s57 = sphi 0, %s55
      %s58 = sphi 0, %s57
      %s72 = sphi 0, %s58
      %s76 = sphi 0, %s76
      %s78 = sphi 0, %s76
      %s79 = sphi 0, %s78
      %s93 = sphi 0, %s79
      %s97 = sphi 0, %s97
      %s99 = sphi 0, %s97
      %s100 = sphi 0, %s99
      %s114 = sphi 0, %s100
      %s118 = sphi 0, %s118
      %s120 = sphi 0, %s118
      %s121 = sphi 0, %s120
      %s135 = sphi 0, %s121
      %s139 = sphi 0, %s139
      %s141 = sphi 0, %s139
      %s142 = sphi 0, %s141
      %s156 = sphi 0, %s142
      %s160 = sphi 0, %s160
      %s162 = sphi 0, %s160
      %s163 = sphi 0, %s162
      %s177 = sphi 0, %s163
      %s181 = sphi 0, %s181
      %s183 = sphi 0, %s181
      %s184 = sphi 0, %s183
      %s198 = sphi 0, %s184
      %s204 = sphi 0, %s206
      %s207 = sphi 0, %s204
      %s208 = sphi 0, %s207
      %s224 = sphi 0, %s208
      %s230 = sphi 0, %s232
      %s233 = sphi 0, %s230
      %s234 = sphi 0, %s233
      %s250 = sphi 0, %s234
    $region4: #{transformer_with_value_head_forward.3} parent=1 // loop_header_branch
      %24 = sbr.rel (%p22) target = $region8
    $region5: #{transformer_with_value_head_forward.3} parent=1 // loop_body
      %s26 = ssub.s32 %s21, 1
      %s27 = ssub.s32 %s21, 2
      %s28 = sadd.s32 %s21, 1
      %s29 = ssub.s32 %s21, %s28
      %p30 = scmp.eq.s32.totalorder %s29, 0
      %s32 = sadd.s32 %s31, 1
      %s33 = scalar_select %p30, %s31, %s32
      %p36 = pneg %p30
      %p37 = scmp.eq.s32.totalorder %s21, 1
      %p38 = por %p36, %p37
      %p39 = scmp.ne.s32.totalorder %s31, %s34
      %p40 = scmp.eq.s32.totalorder %s21, 0
      %p41 = por %p39, %p40
      %p42 = scmp.ne.s32.totalorder %s31, %s34
      %p43 = scmp.eq.s32.totalorder %s26, 1
      %p44 = por %p42, %p43
      %p45 = scmp.ne.s32.totalorder %s34, %s35
      %p46 = scmp.eq.s32.totalorder %s26, 0
      %p47 = por %p45, %p46
      %p48 = scmp.ne.s32.totalorder %s34, %s35
      %p49 = scmp.eq.s32.totalorder %s27, 1
      %p50 = por %p48, %p49
      %p52 = scmp.ne.s32.totalorder %s35, %s51
      %p53 = scmp.eq.s32.totalorder %s27, 0
      %p54 = por %p52, %p53
      %s56 = sadd.s32 %s55, 1
      %p59 = scmp.eq.s32.totalorder %s21, 1
      %p60 = scmp.ne.s32.totalorder %s55, %s57
      %p61 = scmp.eq.s32.totalorder %s21, 0
      %p62 = por %p60, %p61
      %p63 = scmp.ne.s32.totalorder %s55, %s57
      %p64 = scmp.eq.s32.totalorder %s26, 1
      %p65 = por %p63, %p64
      %p66 = scmp.ne.s32.totalorder %s57, %s58
      %p67 = scmp.eq.s32.totalorder %s26, 0
      %p68 = por %p66, %p67
      %p69 = scmp.ne.s32.totalorder %s57, %s58
      %p70 = scmp.eq.s32.totalorder %s27, 1
      %p71 = por %p69, %p70
      %p73 = scmp.ne.s32.totalorder %s58, %s72
      %p74 = scmp.eq.s32.totalorder %s27, 0
      %p75 = por %p73, %p74
      %s77 = sadd.s32 %s76, 1
      %p80 = scmp.eq.s32.totalorder %s21, 1
      %p81 = scmp.ne.s32.totalorder %s76, %s78
      %p82 = scmp.eq.s32.totalorder %s21, 0
      %p83 = por %p81, %p82
      %p84 = scmp.ne.s32.totalorder %s76, %s78
      %p85 = scmp.eq.s32.totalorder %s26, 1
      %p86 = por %p84, %p85
      %p87 = scmp.ne.s32.totalorder %s78, %s79
      %p88 = scmp.eq.s32.totalorder %s26, 0
      %p89 = por %p87, %p88
      %p90 = scmp.ne.s32.totalorder %s78, %s79
      %p91 = scmp.eq.s32.totalorder %s27, 1
      %p92 = por %p90, %p91
      %p94 = scmp.ne.s32.totalorder %s79, %s93
      %p95 = scmp.eq.s32.totalorder %s27, 0
      %p96 = por %p94, %p95
      %s98 = sadd.s32 %s97, 1
      %p101 = scmp.eq.s32.totalorder %s21, 1
      %p102 = scmp.ne.s32.totalorder %s97, %s99
      %p103 = scmp.eq.s32.totalorder %s21, 0
      %p104 = por %p102, %p103
      %p105 = scmp.ne.s32.totalorder %s97, %s99
      %p106 = scmp.eq.s32.totalorder %s26, 1
      %p107 = por %p105, %p106
      %p108 = scmp.ne.s32.totalorder %s99, %s100
      %p109 = scmp.eq.s32.totalorder %s26, 0
      %p110 = por %p108, %p109
      %p111 = scmp.ne.s32.totalorder %s99, %s100
      %p112 = scmp.eq.s32.totalorder %s27, 1
      %p113 = por %p111, %p112
      %p115 = scmp.ne.s32.totalorder %s100, %s114
      %p116 = scmp.eq.s32.totalorder %s27, 0
      %p117 = por %p115, %p116
      %s119 = sadd.s32 %s118, 1
      %p122 = scmp.eq.s32.totalorder %s21, 1
      %p123 = scmp.ne.s32.totalorder %s118, %s120
      %p124 = scmp.eq.s32.totalorder %s21, 0
      %p125 = por %p123, %p124
      %p126 = scmp.ne.s32.totalorder %s118, %s120
      %p127 = scmp.eq.s32.totalorder %s26, 1
      %p128 = por %p126, %p127
      %p129 = scmp.ne.s32.totalorder %s120, %s121
      %p130 = scmp.eq.s32.totalorder %s26, 0
      %p131 = por %p129, %p130
      %p132 = scmp.ne.s32.totalorder %s120, %s121
      %p133 = scmp.eq.s32.totalorder %s27, 1
      %p134 = por %p132, %p133
      %p136 = scmp.ne.s32.totalorder %s121, %s135
      %p137 = scmp.eq.s32.totalorder %s27, 0
      %p138 = por %p136, %p137
      %s140 = sadd.s32 %s139, 1
      %p143 = scmp.eq.s32.totalorder %s21, 1
      %p144 = scmp.ne.s32.totalorder %s139, %s141
      %p145 = scmp.eq.s32.totalorder %s21, 0
      %p146 = por %p144, %p145
      %p147 = scmp.ne.s32.totalorder %s139, %s141
      %p148 = scmp.eq.s32.totalorder %s26, 1
      %p149 = por %p147, %p148
      %p150 = scmp.ne.s32.totalorder %s141, %s142
      %p151 = scmp.eq.s32.totalorder %s26, 0
      %p152 = por %p150, %p151
      %p153 = scmp.ne.s32.totalorder %s141, %s142
      %p154 = scmp.eq.s32.totalorder %s27, 1
      %p155 = por %p153, %p154
      %p157 = scmp.ne.s32.totalorder %s142, %s156
      %p158 = scmp.eq.s32.totalorder %s27, 0
      %p159 = por %p157, %p158
      %s161 = sadd.s32 %s160, 1
      %p164 = scmp.eq.s32.totalorder %s21, 1
      %p165 = scmp.ne.s32.totalorder %s160, %s162
      %p166 = scmp.eq.s32.totalorder %s21, 0
      %p167 = por %p165, %p166
      %p168 = scmp.ne.s32.totalorder %s160, %s162
      %p169 = scmp.eq.s32.totalorder %s26, 1
      %p170 = por %p168, %p169
      %p171 = scmp.ne.s32.totalorder %s162, %s163
      %p172 = scmp.eq.s32.totalorder %s26, 0
      %p173 = por %p171, %p172
      %p174 = scmp.ne.s32.totalorder %s162, %s163
      %p175 = scmp.eq.s32.totalorder %s27, 1
      %p176 = por %p174, %p175
      %p178 = scmp.ne.s32.totalorder %s163, %s177
      %p179 = scmp.eq.s32.totalorder %s27, 0
      %p180 = por %p178, %p179
      %s182 = sadd.s32 %s181, 1
      %p185 = scmp.eq.s32.totalorder %s21, 1
      %p186 = scmp.ne.s32.totalorder %s181, %s183
      %p187 = scmp.eq.s32.totalorder %s21, 0
      %p188 = por %p186, %p187
      %p189 = scmp.ne.s32.totalorder %s181, %s183
      %p190 = scmp.eq.s32.totalorder %s26, 1
      %p191 = por %p189, %p190
      %p192 = scmp.ne.s32.totalorder %s183, %s184
      %p193 = scmp.eq.s32.totalorder %s26, 0
      %p194 = por %p192, %p193
      %p195 = scmp.ne.s32.totalorder %s183, %s184
      %p196 = scmp.eq.s32.totalorder %s27, 1
      %p197 = por %p195, %p196
      %p199 = scmp.ne.s32.totalorder %s184, %s198
      %p200 = scmp.eq.s32.totalorder %s27, 0
      %p201 = por %p199, %p200
      %s202 = ssub.s32 %s21, %s28
      %p203 = scmp.eq.s32.totalorder %s202, 0
      %s205 = sadd.s32 %s204, 1
      %s206 = scalar_select %p203, %s204, %s205
      %p209 = pneg %p203
      %p210 = scmp.eq.s32.totalorder %s21, 1
      %p211 = por %p209, %p210
      %p212 = scmp.ne.s32.totalorder %s204, %s207
      %p213 = scmp.eq.s32.totalorder %s21, 0
      %p214 = por %p212, %p213
      %p215 = scmp.ne.s32.totalorder %s204, %s207
      %p216 = scmp.eq.s32.totalorder %s26, 1
      %p217 = por %p215, %p216
      %p218 = scmp.ne.s32.totalorder %s207, %s208
      %p219 = scmp.eq.s32.totalorder %s26, 0
      %p220 = por %p218, %p219
      %p221 = scmp.ne.s32.totalorder %s207, %s208
      %p222 = scmp.eq.s32.totalorder %s27, 1
      %p223 = por %p221, %p222
      %p225 = scmp.ne.s32.totalorder %s208, %s224
      %p226 = scmp.eq.s32.totalorder %s27, 0
      %p227 = por %p225, %p226
      %s228 = ssub.s32 %s21, %s28
      %p229 = scmp.eq.s32.totalorder %s228, 0
      %s231 = sadd.s32 %s230, 1
      %s232 = scalar_select %p229, %s230, %s231
      %p235 = pneg %p229
      %p236 = scmp.eq.s32.totalorder %s21, 1
      %p237 = por %p235, %p236
      %p238 = scmp.ne.s32.totalorder %s230, %s233
      %p239 = scmp.eq.s32.totalorder %s21, 0
      %p240 = por %p238, %p239
      %p241 = scmp.ne.s32.totalorder %s230, %s233
      %p242 = scmp.eq.s32.totalorder %s26, 1
      %p243 = por %p241, %p242
      %p244 = scmp.ne.s32.totalorder %s233, %s234
      %p245 = scmp.eq.s32.totalorder %s26, 0
      %p246 = por %p244, %p245
      %p247 = scmp.ne.s32.totalorder %s233, %s234
      %p248 = scmp.eq.s32.totalorder %s27, 1
      %p249 = por %p247, %p248
      %p251 = scmp.ne.s32.totalorder %s234, %s250
      %p252 = scmp.eq.s32.totalorder %s27, 0
      %p253 = por %p251, %p252
      %p254 = scmp.le.s32.totalorder 1, %s21
      %p255 = scmp.lt.s32.totalorder %s21, 3
      %p256 = pnand %p254, %p255
      %p257 = pneg %p256
      // Predicated region
      $region9: #{transformer_with_value_head_forward.3} parent=5 // pred_check
        _
      $region10: #{transformer_with_value_head_forward.3} parent=5 // pred_check_branch
        %259 = sbr.rel (%p256) target = $region12
      $region11: #{transformer_with_value_head_forward.3} parent=5 // pred_region
        %s260 = ssub.s32 %s21, 1
        // Predicated region
        $region13: #{transformer_with_value_head_forward.3} parent=11 // pred_check
          %p261 = pneg %p68
        $region14: #{transformer_with_value_head_forward.3} parent=11 // pred_check_branch
          %263 = sbr.rel (%p261) target = $region16
        $region15: #{transformer_with_value_head_forward.3} parent=11 // pred_region
          _
        $region16: #{transformer_with_value_head_forward.3} parent=11 // pred_fallthru
          _
        // Predicated region
        $region17: #{transformer_with_value_head_forward.3} parent=11 // pred_check
          %p264 = pneg %p89
        $region18: #{transformer_with_value_head_forward.3} parent=11 // pred_check_branch
          %266 = sbr.rel (%p264) target = $region20
        $region19: #{transformer_with_value_head_forward.3} parent=11 // pred_region
          _
        $region20: #{transformer_with_value_head_forward.3} parent=11 // pred_fallthru
          _
        // Predicated region
        $region21: #{transformer_with_value_head_forward.3} parent=11 // pred_check
          %p267 = pneg %p110
        $region22: #{transformer_with_value_head_forward.3} parent=11 // pred_check_branch
          %269 = sbr.rel (%p267) target = $region24
        $region23: #{transformer_with_value_head_forward.3} parent=11 // pred_region
          _
        $region24: #{transformer_with_value_head_forward.3} parent=11 // pred_fallthru
          _
        // Predicated region
        $region25: #{transformer_with_value_head_forward.3} parent=11 // pred_check
          %p270 = pneg %p131
        $region26: #{transformer_with_value_head_forward.3} parent=11 // pred_check_branch
          %272 = sbr.rel (%p270) target = $region28
        $region27: #{transformer_with_value_head_forward.3} parent=11 // pred_region
          _
        $region28: #{transformer_with_value_head_forward.3} parent=11 // pred_fallthru
          _
        // Predicated region
        $region29: #{transformer_with_value_head_forward.3} parent=11 // pred_check
          %p273 = pneg %p152
        $region30: #{transformer_with_value_head_forward.3} parent=11 // pred_check_branch
          %275 = sbr.rel (%p273) target = $region32
        $region31: #{transformer_with_value_head_forward.3} parent=11 // pred_region
          _
        $region32: #{transformer_with_value_head_forward.3} parent=11 // pred_fallthru
          _
        // Predicated region
        $region33: #{transformer_with_value_head_forward.3} parent=11 // pred_check
          %p276 = pneg %p173
        $region34: #{transformer_with_value_head_forward.3} parent=11 // pred_check_branch
          %278 = sbr.rel (%p276) target = $region36
        $region35: #{transformer_with_value_head_forward.3} parent=11 // pred_region
          _
        $region36: #{transformer_with_value_head_forward.3} parent=11 // pred_fallthru
          _
        // Predicated region
        $region37: #{transformer_with_value_head_forward.3} parent=11 // pred_check
          %p279 = pneg %p194
        $region38: #{transformer_with_value_head_forward.3} parent=11 // pred_check_branch
          %281 = sbr.rel (%p279) target = $region40
        $region39: #{transformer_with_value_head_forward.3} parent=11 // pred_region
          _
        $region40: #{transformer_with_value_head_forward.3} parent=11 // pred_fallthru
          _
      $region12: #{transformer_with_value_head_forward.3} parent=5 // pred_fallthru
        _
      %p282 = scmp.lt.s32.totalorder %s21, 2
      // Predicated region
      $region41: #{transformer_with_value_head_forward.3} parent=5 // pred_check
        %p283 = pneg %p282
      $region42: #{transformer_with_value_head_forward.3} parent=5 // pred_check_branch
        %285 = sbr.rel (%p283) target = $region44
      $region43: #{transformer_with_value_head_forward.3} parent=5 // pred_region
        // Predicated region
        $region45: #{transformer_with_value_head_forward.3} parent=43 // pred_check
          %p286 = pneg %p41
        $region46: #{transformer_with_value_head_forward.3} parent=43 // pred_check_branch
          %288 = sbr.rel (%p286) target = $region48
        $region47: #{transformer_with_value_head_forward.3} parent=43 // pred_region
          %p289 = scmp.lt.s32.totalorder %s21, 1
          %s290 = scalar_select %p289, %s21, 1
          %s291 = smul.addr %s290, 8
          %s292 = scalar_lea.vmem %s0, %s291
        $region48: #{transformer_with_value_head_forward.3} parent=43 // pred_fallthru
          _
      $region44: #{transformer_with_value_head_forward.3} parent=5 // pred_fallthru
        _
      %p293 = scmp.le.s32.totalorder 1, %s21
      %p294 = scmp.lt.s32.totalorder %s21, 3
      %p295 = pnand %p293, %p294
      %p296 = pneg %p295
      // Predicated region
      $region49: #{transformer_with_value_head_forward.3} parent=5 // pred_check
        _
      $region50: #{transformer_with_value_head_forward.3} parent=5 // pred_check_branch
        %298 = sbr.rel (%p295) target = $region52
      $region51: #{transformer_with_value_head_forward.3} parent=5 // pred_region
        %s299 = ssub.s32 %s21, 1
        %p300 = scmp.lt.s32.totalorder %s26, 1
        %s301 = scalar_select %p300, %s26, 1
        %s302 = smul.addr %s301, 8
        %s303 = scalar_lea.vmem %s0, %s302
        %p304 = pneg %p47
        %p305 = pneg %p44
        %p306 = pneg %p68
        %p307 = pneg %p65
        %p308 = pneg %p89
        %p309 = pneg %p86
        %p310 = pneg %p110
        %p311 = pneg %p107
        %p312 = pneg %p131
        %p313 = pneg %p128
        %p314 = pneg %p152
        %p315 = pneg %p149
        %p316 = pneg %p173
        %p317 = pneg %p170
        %p318 = pneg %p194
        %p319 = pneg %p191
        %p320 = pneg %p220
        %p321 = pneg %p217
        %s322 = sand.u32 %s207, 1
        %s323 = scalar_lea.sflag [#allocation4], %s322
        %s324 = sand.u32 %s207, 1
        %s325 = smul.addr %s324, 8
        %s326 = scalar_lea.vmem [#allocation3], %s325
        %p327 = pneg %p246
        %p328 = pneg %p243
        %p329 = scmp.lt.s32.totalorder %s26, 1
        %s330 = scalar_select %p329, %s26, 1
        %s331 = smul.addr %s330, 8
        %s332 = scalar_lea.vmem %s9, %s331
        %p333 = scmp.lt.s32.totalorder %s26, 1
        %s334 = scalar_select %p333, %s26, 1
        %s335 = smul.addr %s334, 8
        %s336 = scalar_lea.vmem %s0, %s335
        %p337 = scmp.lt.s32.totalorder %s26, 1
        %s338 = scalar_select %p337, %s26, 1
        %s339 = smul.addr %s338, 8
        %s340 = scalar_lea.vmem %s9, %s339
        %v342 = vld [vmem:[%s336] sm:$0xff]
        %v343 = vld [vmem:[%s1] sm:$0x3]
        %vm344 = vcmask 261120
        %v345 = vsel %vm344, %v342, 0.0
        %346 = vadd.xlane.f32.xlu0 %v345
        %v347 = vpop.xlane.xlu0 %346
        %v348 = vrcp.pop 32.0
        %v349 = vmul.f32 %v347, %v348
        %v350 = vsub.f32 %v342, %v349
        %v351 = vmul.f32 %v350, %v350
        %v352 = vsel %vm344, %v351, 0.0
        %353 = vadd.xlane.f32.xlu0 %v352
        %v354 = vpop.xlane.xlu0 %353
        %v355 = vmul.f32 %v354, %v348
        %v356 = vadd.f32 %v355, 1e-05
        %v357 = vrsqrt.pop %v356
        %v358 = vmul.f32 %v350, %v357
        %v359 = vlaneseq
        %v360 = vshrl.u32 %v359, 7
        %v361 = vsub.s32 0, %v360
        %v362 = vrot.slane %v343, %v361
        %v363 = vmul.f32 %v358, %v362
        %v364 = vlaneseq
        %v365 = vshrl.u32 %v364, 7
        %v366 = vsub.s32 1, %v365
        %v367 = vrot.slane %v343, %v366
        %v368 = vadd.f32 %v363, %v367
        %v369 = vpack.c.bf16 %v368, %v368
        %v370 = vld [vmem:[%s2] sm:$0xf]
        %v371 = vld [vmem:[%s2 + $0x4] sm:$0xf]
        %v372 = vld [vmem:[%s2 + $0x8] sm:$0xf]
        %v373 = vld [vmem:[%s2 + $0xc] sm:$0xf]
        %v374 = vld [vmem:[%s3] sm:$0x1]
        %v376 = vlaneseq
        %v377 = vshrl.u32 %v376, 7
        %v378 = vsub.s32 0, %v377
        %v379 = vrot.slane %v374, %v378
        %v385 = vunpack.c.l.b16 %v370
        %v386 = vunpack.c.l.b16 %v371
        %v387 = vunpack.c.l.b16 %v372
        %v388 = vunpack.c.l.b16 %v373
        %v389 = vpack.c.b16 %v386, %v385
        %v390 = vpack.c.b16 %v388, %v387
        %v394 = vsel %vm344, %v369, 0
        %396 = vmatprep.subr.bf16.mxu0 0
        %397 = vmatpush1.bf16.msra.mxu0 %v389
        %398 = vmatprep.subr.bf16.mxu0 0
        %399 = vmatpush1.bf16.msra.mxu0 %v390
        %400 = vmatprep.subr.bf16.mxu0 0
        %401 = vmatpush1.bf16.msra.mxu0 0
        %402 = vmatprep.subr.bf16.mxu0 0
        %403 = vmatpush1.bf16.msra.mxu0 0
        %404 = vmatprep.subr.bf16.mxu0 0
        %405 = vmatpush1.bf16.msra.mxu0 0
        %406 = vmatprep.subr.bf16.mxu0 0
        %407 = vmatpush1.bf16.msra.mxu0 0
        %408 = vmatprep.subr.bf16.mxu0 0
        %409 = vmatpush1.bf16.msra.mxu0 0
        %410 = vmatprep.subr.bf16.mxu0 0
        %411 = vmatpush1.bf16.msra.mxu0 0
        %412 = vmatprep.subr.bf16.mxu0 0
        %413 = vmatpush1.bf16.msra.mxu0 0
        %414 = vmatprep.subr.bf16.mxu0 0
        %415 = vmatpush1.bf16.msra.mxu0 0
        %416 = vmatprep.subr.bf16.mxu0 0
        %417 = vmatpush1.bf16.msra.mxu0 0
        %418 = vmatprep.subr.bf16.mxu0 0
        %419 = vmatpush1.bf16.msra.mxu0 0
        %420 = vmatprep.subr.bf16.mxu0 0
        %421 = vmatpush1.bf16.msra.mxu0 0
        %422 = vmatprep.subr.bf16.mxu0 0
        %423 = vmatpush1.bf16.msra.mxu0 0
        %424 = vmatprep.subr.bf16.mxu0 0
        %425 = vmatpush1.bf16.msra.mxu0 0
        %426 = vmatprep.subr.bf16.mxu0 0
        %427 = vmatpush1.bf16.msra.mxu0 0
        %428 = vmatprep.mubr.bf16.mxu0 0
        %429 = vmatmul.mubr.bf16.gmra.mrb[0].mxu0 %v394
        %v430 = vpop.f32.mrb[0].mxu0
        %v431 = vadd.f32 %v379, %v430
        %v432 = vpop.f32.mrb[0].mxu0
        %v433 = vpop.f32.mrb[0].mxu0
        %v434 = vpop.f32.mrb[0].mxu0
        %435 = vdwg.mxu0
        %vm436 = vcmask 523264
        %437 = vst.msk [vmem:[%s326] sm:$0xff] %vm436, %v431
        %v438 = vld [vmem:[%s4] sm:$0xf]
        %v439 = vld [vmem:[%s4 + $0x4] sm:$0xf]
        %v440 = vld [vmem:[%s4 + $0x8] sm:$0xf]
        %v441 = vld [vmem:[%s4 + $0xc] sm:$0xf]
        %v442 = vld [vmem:[%s5] sm:$0x1]
        %v444 = vlaneseq
        %v445 = vshrl.u32 %v444, 7
        %v446 = vsub.s32 0, %v445
        %v447 = vrot.slane %v442, %v446
        %v453 = vunpack.c.l.b16 %v438
        %v454 = vunpack.c.l.b16 %v439
        %v455 = vunpack.c.l.b16 %v440
        %v456 = vunpack.c.l.b16 %v441
        %v457 = vpack.c.b16 %v454, %v453
        %v458 = vpack.c.b16 %v456, %v455
        %461 = vmatprep.subr.bf16.mxu0 0
        %462 = vmatpush1.bf16.msra.mxu0 %v457
        %463 = vmatprep.subr.bf16.mxu0 0
        %464 = vmatpush1.bf16.msra.mxu0 %v458
        %465 = vmatprep.subr.bf16.mxu0 0
        %466 = vmatpush1.bf16.msra.mxu0 0
        %467 = vmatprep.subr.bf16.mxu0 0
        %468 = vmatpush1.bf16.msra.mxu0 0
        %469 = vmatprep.subr.bf16.mxu0 0
        %470 = vmatpush1.bf16.msra.mxu0 0
        %471 = vmatprep.subr.bf16.mxu0 0
        %472 = vmatpush1.bf16.msra.mxu0 0
        %473 = vmatprep.subr.bf16.mxu0 0
        %474 = vmatpush1.bf16.msra.mxu0 0
        %475 = vmatprep.subr.bf16.mxu0 0
        %476 = vmatpush1.bf16.msra.mxu0 0
        %477 = vmatprep.subr.bf16.mxu0 0
        %478 = vmatpush1.bf16.msra.mxu0 0
        %479 = vmatprep.subr.bf16.mxu0 0
        %480 = vmatpush1.bf16.msra.mxu0 0
        %481 = vmatprep.subr.bf16.mxu0 0
        %482 = vmatpush1.bf16.msra.mxu0 0
        %483 = vmatprep.subr.bf16.mxu0 0
        %484 = vmatpush1.bf16.msra.mxu0 0
        %485 = vmatprep.subr.bf16.mxu0 0
        %486 = vmatpush1.bf16.msra.mxu0 0
        %487 = vmatprep.subr.bf16.mxu0 0
        %488 = vmatpush1.bf16.msra.mxu0 0
        %489 = vmatprep.subr.bf16.mxu0 0
        %490 = vmatpush1.bf16.msra.mxu0 0
        %491 = vmatprep.subr.bf16.mxu0 0
        %492 = vmatpush1.bf16.msra.mxu0 0
        %493 = vmatprep.mubr.bf16.mxu0 0
        %494 = vmatmul.mubr.bf16.gmra.mrb[0].mxu0 %v394
        %v495 = vpop.f32.mrb[0].mxu0
        %v496 = vadd.f32 %v447, %v495
        %v497 = vpop.f32.mrb[0].mxu0
        %v498 = vpop.f32.mrb[0].mxu0
        %v499 = vpop.f32.mrb[0].mxu0
        %500 = vdwg.mxu0
        %v501 = vmax.f32 %v496, 0.0
        %v502 = vld [vmem:[%s6] sm:$0x1]
        %v504 = vlaneseq
        %v505 = vshrl.u32 %v504, 7
        %v506 = vsub.s32 0, %v505
        %v507 = vrot.slane %v502, %v506
        %v509 = vmul.f32 %v501, %v507
        %510 = vadd.xlane.f32.xlu0 %v509
        %v511 = vpop.xlane.xlu0 %510
        %v512 = vld [vmem:[#allocation2] sm:$0x1]
        %v514 = vlaneseq
        %v515 = vshrl.u32 %v514, 7
        %v516 = vsub.s32 0, %v515
        %v517 = vrot.slane %v512, %v516
        %v519 = vadd.f32 %v511, %v517
        %vm520 = vcmask 7168
        %521 = vst.msk [vmem:[%s340] sm:$0xff] %vm520, %v519
        %s522 = sand.u32 %s207, 1
        %s523 = scalar_lea.sflag [#allocation4], %s522
        %s524 = sand.u32 %s207, 1
        %s525 = smul.addr %s524, 8
        %s526 = scalar_lea.vmem [#allocation3], %s525
        %p527 = scmp.lt.s32.totalorder %s26, 1
        %s528 = scalar_select %p527, %s26, 1
        %s529 = smul.addr %s528, 8
        %s530 = scalar_lea.vmem %s9, %s529
        // Predicated region
        $region53: #{transformer_with_value_head_forward.3} parent=51 // pred_check
          %p531 = pneg %p217
        $region54: #{transformer_with_value_head_forward.3} parent=51 // pred_check_branch
          %533 = sbr.rel (%p531) target = $region56
        $region55: #{transformer_with_value_head_forward.3} parent=51 // pred_region
          %s535 = ssub.s32 128, 128
          %536 = vsyncadd %s523, %s535
          %s537 = smul.addr %s26, 128
          %s538 = scalar_lea.hbm %s8, %s537
          %s540 = sshll.u32 %s526, 4
          %s541 = int_to_ptr.vmem [resolvable:$true] %s540
          %543 = dma.vmem_to_hbm [thread:$0]  %s541, 128, %s538, %s523
        $region56: #{transformer_with_value_head_forward.3} parent=51 // pred_fallthru
          _
        // Predicated region
        $region57: #{transformer_with_value_head_forward.3} parent=51 // pred_check
          %p544 = pneg %p243
        $region58: #{transformer_with_value_head_forward.3} parent=51 // pred_check_branch
          %546 = sbr.rel (%p544) target = $region60
        $region59: #{transformer_with_value_head_forward.3} parent=51 // pred_region
          _
        $region60: #{transformer_with_value_head_forward.3} parent=51 // pred_fallthru
          _
      $region52: #{transformer_with_value_head_forward.3} parent=5 // pred_fallthru
        _
      %p547 = scmp.le.s32.totalorder 2, %s21
      // Predicated region
      $region61: #{transformer_with_value_head_forward.3} parent=5 // pred_check
        %p548 = pneg %p547
      $region62: #{transformer_with_value_head_forward.3} parent=5 // pred_check_branch
        %550 = sbr.rel (%p548) target = $region64
      $region63: #{transformer_with_value_head_forward.3} parent=5 // pred_region
        %s551 = ssub.s32 %s21, 2
        // Predicated region
        $region65: #{transformer_with_value_head_forward.3} parent=63 // pred_check
          %p552 = pneg %p223
        $region66: #{transformer_with_value_head_forward.3} parent=63 // pred_check_branch
          %554 = sbr.rel (%p552) target = $region68
        $region67: #{transformer_with_value_head_forward.3} parent=63 // pred_region
          %s555 = sand.u32 %s208, 1
          %s556 = scalar_lea.sflag [#allocation4], %s555
          %s557 = sand.u32 %s208, 1
          %s558 = smul.addr %s557, 8
          %s559 = scalar_lea.vmem [#allocation3], %s558
          %560 = dma.done %s556, 128
        $region68: #{transformer_with_value_head_forward.3} parent=63 // pred_fallthru
          _
        // Predicated region
        $region69: #{transformer_with_value_head_forward.3} parent=63 // pred_check
          %p561 = pneg %p249
        $region70: #{transformer_with_value_head_forward.3} parent=63 // pred_check_branch
          %563 = sbr.rel (%p561) target = $region72
        $region71: #{transformer_with_value_head_forward.3} parent=63 // pred_region
          %p564 = scmp.lt.s32.totalorder %s27, 1
          %s565 = scalar_select %p564, %s27, 1
          %s566 = smul.addr %s565, 8
          %s567 = scalar_lea.vmem %s9, %s566
        $region72: #{transformer_with_value_head_forward.3} parent=63 // pred_fallthru
          _
      $region64: #{transformer_with_value_head_forward.3} parent=5 // pred_fallthru
        _
    $region6: #{transformer_with_value_head_forward.3} parent=1 // loop_footer
      %s25 = sadd.s32 1, %s21
    $region7: #{transformer_with_value_head_forward.3} parent=1 // loop_footer_branch
      %20 = sbr.rel target = $region3
    $region8: #{transformer_with_value_head_forward.3} parent=1 // loop_exit
      _
    %568 = vsyncpa [#allocation4], 1
    %s569 = scalar_lea.sflag [#allocation4], 1
    %570 = vsyncpa %s569, 1

// kernel: transformer_with_value_head_forward.2
$region0: #{transformer_with_value_head_forward.2}
  #allocation0 [shape = 'u32[]', space=smem, size = 0x4, offset = 0x4, fixed_abs, tag = 'smem constant byte address 0x4 - core index']
  #allocation1 [shape = 'u32[144,128]{1,0:T(1,128)}', space=vmem, size = 0x12000, scoped, tag = 'internal scratch']
  #allocation2 [shape = 'f32[8,32]{1,0:T(8,128)}', space=vmem, size = 0x1000, scoped, tag = 'scratch operand']
  %s0 = inlined_call_operand.vmem [shape: f32[2,8,32], index: 0, kind: input, shape index: {}]
  %s1 = inlined_call_operand.vmem [shape: f32[8,8], index: 1, kind: input, shape index: {}]
  %s2 = inlined_call_operand.vmem [shape: f32[2,6,32], index: 2, kind: input, shape index: {}]
  %s3 = inlined_call_operand.vmem [shape: bf16[2,32,96], index: 3, kind: input, shape index: {}]
  %s4 = inlined_call_operand.vmem [shape: f32[2,1,96], index: 4, kind: input, shape index: {}]
  %s5 = inlined_call_operand.vmem [shape: bf16[2,32,32], index: 5, kind: input, shape index: {}]
  %s6 = inlined_call_operand.vmem [shape: bf16[2,32,128], index: 6, kind: input, shape index: {}]
  %s7 = inlined_call_operand.vmem [shape: f32[2,1,128], index: 7, kind: input, shape index: {}]
  %s8 = inlined_call_operand.vmem [shape: bf16[2,128,32], index: 8, kind: input, shape index: {}]
  %s9 = inlined_call_operand.vmem [shape: f32[2,8,32], index: 9, kind: output, shape index: {}]
  %s10 = sld [smem:[#allocation0]]
  $region77: #{transformer_with_value_head_forward.2} parent=0
    _
  %s12 = ssub.s32 1, %s10
  %s13 = scalar_select 0, %s12, %s10
  loop: start=0, step=1, limit=6
  $region2: #{transformer_with_value_head_forward.2} parent=0 // loop_pre_header
    _
  $region3: #{transformer_with_value_head_forward.2} parent=0 // loop_header
    %s15 = sphi 0, %s19
    %p16 = scmp.ge.s32.totalorder %s15, 6
    %s22 = sphi 0, %s34
    %s23 = sphi 0, %s30
    %s24 = sphi 0, %s22
    %s25 = sphi 0, %s23
    %s26 = sphi 0, %s24
    %s27 = sphi 0, %s25
    %s37 = sphi 0, %s39
    %s40 = sphi 0, %s37
    %s41 = sphi 0, %s40
    %s57 = sphi 0, %s41
    %s61 = sphi 0, %s61
    %s63 = sphi 0, %s61
    %s64 = sphi 0, %s63
    %s78 = sphi 0, %s64
    %s84 = sphi 0, %s86
    %s87 = sphi 0, %s84
    %s88 = sphi 0, %s87
    %s104 = sphi 0, %s88
    %s110 = sphi 0, %s112
    %s113 = sphi 0, %s110
    %s114 = sphi 0, %s113
    %s130 = sphi 0, %s114
    %s136 = sphi 0, %s138
    %s139 = sphi 0, %s136
    %s140 = sphi 0, %s139
    %s156 = sphi 0, %s140
    %s162 = sphi 0, %s164
    %s165 = sphi 0, %s162
    %s166 = sphi 0, %s165
    %s182 = sphi 0, %s166
    %s188 = sphi 0, %s190
    %s191 = sphi 0, %s188
    %s192 = sphi 0, %s191
    %s208 = sphi 0, %s192
    %s214 = sphi 0, %s216
    %s217 = sphi 0, %s214
    %s218 = sphi 0, %s217
    %s234 = sphi 0, %s218
    %s240 = sphi 0, %s242
    %s243 = sphi 0, %s240
    %s244 = sphi 0, %s243
    %s260 = sphi 0, %s244
    %s266 = sphi 0, %s268
    %s269 = sphi 0, %s266
    %s270 = sphi 0, %s269
    %s286 = sphi 0, %s270
  $region4: #{transformer_with_value_head_forward.2} parent=0 // loop_header_branch
    %18 = sbr.rel (%p16) target = $region8
  $region5: #{transformer_with_value_head_forward.2} parent=0 // loop_body
    %s20 = ssub.s32 %s15, 1
    %s21 = ssub.s32 %s15, 2
    %s28 = sadd.s32 1, %s23
    %p29 = scmp.ge.s32.totalorder %s28, 2
    %s30 = scalar_select %p29, 0, %s28
    %s31 = sadd.s32 1, %s22
    %s32 = scalar_select %p29, %s31, %s22
    %p33 = scmp.ge.s32.totalorder %s32, 2
    %s34 = scalar_select %p33, 0, %s32
    %s35 = ssub.s32 %s22, %s34
    %p36 = scmp.eq.s32.totalorder %s35, 0
    %s38 = sadd.s32 %s37, 1
    %s39 = scalar_select %p36, %s37, %s38
    %p42 = pneg %p36
    %p43 = scmp.eq.s32.totalorder %s15, 3
    %p44 = por %p42, %p43
    %p45 = scmp.ne.s32.totalorder %s37, %s40
    %p46 = scmp.eq.s32.totalorder %s15, 0
    %p47 = por %p45, %p46
    %p48 = scmp.ne.s32.totalorder %s37, %s40
    %p49 = scmp.eq.s32.totalorder %s20, 3
    %p50 = por %p48, %p49
    %p51 = scmp.ne.s32.totalorder %s40, %s41
    %p52 = scmp.eq.s32.totalorder %s20, 0
    %p53 = por %p51, %p52
    %p54 = scmp.ne.s32.totalorder %s40, %s41
    %p55 = scmp.eq.s32.totalorder %s21, 3
    %p56 = por %p54, %p55
    %p58 = scmp.ne.s32.totalorder %s41, %s57
    %p59 = scmp.eq.s32.totalorder %s21, 0
    %p60 = por %p58, %p59
    %s62 = sadd.s32 %s61, 1
    %p65 = scmp.eq.s32.totalorder %s15, 3
    %p66 = scmp.ne.s32.totalorder %s61, %s63
    %p67 = scmp.eq.s32.totalorder %s15, 0
    %p68 = por %p66, %p67
    %p69 = scmp.ne.s32.totalorder %s61, %s63
    %p70 = scmp.eq.s32.totalorder %s20, 3
    %p71 = por %p69, %p70
    %p72 = scmp.ne.s32.totalorder %s63, %s64
    %p73 = scmp.eq.s32.totalorder %s20, 0
    %p74 = por %p72, %p73
    %p75 = scmp.ne.s32.totalorder %s63, %s64
    %p76 = scmp.eq.s32.totalorder %s21, 3
    %p77 = por %p75, %p76
    %p79 = scmp.ne.s32.totalorder %s64, %s78
    %p80 = scmp.eq.s32.totalorder %s21, 0
    %p81 = por %p79, %p80
    %s82 = ssub.s32 %s23, %s30
    %p83 = scmp.eq.s32.totalorder %s82, 0
    %s85 = sadd.s32 %s84, 1
    %s86 = scalar_select %p83, %s84, %s85
    %p89 = pneg %p83
    %p90 = scmp.eq.s32.totalorder %s15, 3
    %p91 = por %p89, %p90
    %p92 = scmp.ne.s32.totalorder %s84, %s87
    %p93 = scmp.eq.s32.totalorder %s15, 0
    %p94 = por %p92, %p93
    %p95 = scmp.ne.s32.totalorder %s84, %s87
    %p96 = scmp.eq.s32.totalorder %s20, 3
    %p97 = por %p95, %p96
    %p98 = scmp.ne.s32.totalorder %s87, %s88
    %p99 = scmp.eq.s32.totalorder %s20, 0
    %p100 = por %p98, %p99
    %p101 = scmp.ne.s32.totalorder %s87, %s88
    %p102 = scmp.eq.s32.totalorder %s21, 3
    %p103 = por %p101, %p102
    %p105 = scmp.ne.s32.totalorder %s88, %s104
    %p106 = scmp.eq.s32.totalorder %s21, 0
    %p107 = por %p105, %p106
    %s108 = ssub.s32 %s23, %s30
    %p109 = scmp.eq.s32.totalorder %s108, 0
    %s111 = sadd.s32 %s110, 1
    %s112 = scalar_select %p109, %s110, %s111
    %p115 = pneg %p109
    %p116 = scmp.eq.s32.totalorder %s15, 3
    %p117 = por %p115, %p116
    %p118 = scmp.ne.s32.totalorder %s110, %s113
    %p119 = scmp.eq.s32.totalorder %s15, 0
    %p120 = por %p118, %p119
    %p121 = scmp.ne.s32.totalorder %s110, %s113
    %p122 = scmp.eq.s32.totalorder %s20, 3
    %p123 = por %p121, %p122
    %p124 = scmp.ne.s32.totalorder %s113, %s114
    %p125 = scmp.eq.s32.totalorder %s20, 0
    %p126 = por %p124, %p125
    %p127 = scmp.ne.s32.totalorder %s113, %s114
    %p128 = scmp.eq.s32.totalorder %s21, 3
    %p129 = por %p127, %p128
    %p131 = scmp.ne.s32.totalorder %s114, %s130
    %p132 = scmp.eq.s32.totalorder %s21, 0
    %p133 = por %p131, %p132
    %s134 = ssub.s32 %s23, %s30
    %p135 = scmp.eq.s32.totalorder %s134, 0
    %s137 = sadd.s32 %s136, 1
    %s138 = scalar_select %p135, %s136, %s137
    %p141 = pneg %p135
    %p142 = scmp.eq.s32.totalorder %s15, 3
    %p143 = por %p141, %p142
    %p144 = scmp.ne.s32.totalorder %s136, %s139
    %p145 = scmp.eq.s32.totalorder %s15, 0
    %p146 = por %p144, %p145
    %p147 = scmp.ne.s32.totalorder %s136, %s139
    %p148 = scmp.eq.s32.totalorder %s20, 3
    %p149 = por %p147, %p148
    %p150 = scmp.ne.s32.totalorder %s139, %s140
    %p151 = scmp.eq.s32.totalorder %s20, 0
    %p152 = por %p150, %p151
    %p153 = scmp.ne.s32.totalorder %s139, %s140
    %p154 = scmp.eq.s32.totalorder %s21, 3
    %p155 = por %p153, %p154
    %p157 = scmp.ne.s32.totalorder %s140, %s156
    %p158 = scmp.eq.s32.totalorder %s21, 0
    %p159 = por %p157, %p158
    %s160 = ssub.s32 %s23, %s30
    %p161 = scmp.eq.s32.totalorder %s160, 0
    %s163 = sadd.s32 %s162, 1
    %s164 = scalar_select %p161, %s162, %s163
    %p167 = pneg %p161
    %p168 = scmp.eq.s32.totalorder %s15, 3
    %p169 = por %p167, %p168
    %p170 = scmp.ne.s32.totalorder %s162, %s165
    %p171 = scmp.eq.s32.totalorder %s15, 0
    %p172 = por %p170, %p171
    %p173 = scmp.ne.s32.totalorder %s162, %s165
    %p174 = scmp.eq.s32.totalorder %s20, 3
    %p175 = por %p173, %p174
    %p176 = scmp.ne.s32.totalorder %s165, %s166
    %p177 = scmp.eq.s32.totalorder %s20, 0
    %p178 = por %p176, %p177
    %p179 = scmp.ne.s32.totalorder %s165, %s166
    %p180 = scmp.eq.s32.totalorder %s21, 3
    %p181 = por %p179, %p180
    %p183 = scmp.ne.s32.totalorder %s166, %s182
    %p184 = scmp.eq.s32.totalorder %s21, 0
    %p185 = por %p183, %p184
    %s186 = ssub.s32 %s23, %s30
    %p187 = scmp.eq.s32.totalorder %s186, 0
    %s189 = sadd.s32 %s188, 1
    %s190 = scalar_select %p187, %s188, %s189
    %p193 = pneg %p187
    %p194 = scmp.eq.s32.totalorder %s15, 3
    %p195 = por %p193, %p194
    %p196 = scmp.ne.s32.totalorder %s188, %s191
    %p197 = scmp.eq.s32.totalorder %s15, 0
    %p198 = por %p196, %p197
    %p199 = scmp.ne.s32.totalorder %s188, %s191
    %p200 = scmp.eq.s32.totalorder %s20, 3
    %p201 = por %p199, %p200
    %p202 = scmp.ne.s32.totalorder %s191, %s192
    %p203 = scmp.eq.s32.totalorder %s20, 0
    %p204 = por %p202, %p203
    %p205 = scmp.ne.s32.totalorder %s191, %s192
    %p206 = scmp.eq.s32.totalorder %s21, 3
    %p207 = por %p205, %p206
    %p209 = scmp.ne.s32.totalorder %s192, %s208
    %p210 = scmp.eq.s32.totalorder %s21, 0
    %p211 = por %p209, %p210
    %s212 = ssub.s32 %s23, %s30
    %p213 = scmp.eq.s32.totalorder %s212, 0
    %s215 = sadd.s32 %s214, 1
    %s216 = scalar_select %p213, %s214, %s215
    %p219 = pneg %p213
    %p220 = scmp.eq.s32.totalorder %s15, 3
    %p221 = por %p219, %p220
    %p222 = scmp.ne.s32.totalorder %s214, %s217
    %p223 = scmp.eq.s32.totalorder %s15, 0
    %p224 = por %p222, %p223
    %p225 = scmp.ne.s32.totalorder %s214, %s217
    %p226 = scmp.eq.s32.totalorder %s20, 3
    %p227 = por %p225, %p226
    %p228 = scmp.ne.s32.totalorder %s217, %s218
    %p229 = scmp.eq.s32.totalorder %s20, 0
    %p230 = por %p228, %p229
    %p231 = scmp.ne.s32.totalorder %s217, %s218
    %p232 = scmp.eq.s32.totalorder %s21, 3
    %p233 = por %p231, %p232
    %p235 = scmp.ne.s32.totalorder %s218, %s234
    %p236 = scmp.eq.s32.totalorder %s21, 0
    %p237 = por %p235, %p236
    %s238 = ssub.s32 %s23, %s30
    %p239 = scmp.eq.s32.totalorder %s238, 0
    %s241 = sadd.s32 %s240, 1
    %s242 = scalar_select %p239, %s240, %s241
    %p245 = pneg %p239
    %p246 = scmp.eq.s32.totalorder %s15, 3
    %p247 = por %p245, %p246
    %p248 = scmp.ne.s32.totalorder %s240, %s243
    %p249 = scmp.eq.s32.totalorder %s15, 0
    %p250 = por %p248, %p249
    %p251 = scmp.ne.s32.totalorder %s240, %s243
    %p252 = scmp.eq.s32.totalorder %s20, 3
    %p253 = por %p251, %p252
    %p254 = scmp.ne.s32.totalorder %s243, %s244
    %p255 = scmp.eq.s32.totalorder %s20, 0
    %p256 = por %p254, %p255
    %p257 = scmp.ne.s32.totalorder %s243, %s244
    %p258 = scmp.eq.s32.totalorder %s21, 3
    %p259 = por %p257, %p258
    %p261 = scmp.ne.s32.totalorder %s244, %s260
    %p262 = scmp.eq.s32.totalorder %s21, 0
    %p263 = por %p261, %p262
    %s264 = ssub.s32 %s22, %s34
    %p265 = scmp.eq.s32.totalorder %s264, 0
    %s267 = sadd.s32 %s266, 1
    %s268 = scalar_select %p265, %s266, %s267
    %p271 = pneg %p265
    %p272 = scmp.eq.s32.totalorder %s15, 3
    %p273 = por %p271, %p272
    %p274 = scmp.ne.s32.totalorder %s266, %s269
    %p275 = scmp.eq.s32.totalorder %s15, 0
    %p276 = por %p274, %p275
    %p277 = scmp.ne.s32.totalorder %s266, %s269
    %p278 = scmp.eq.s32.totalorder %s20, 3
    %p279 = por %p277, %p278
    %p280 = scmp.ne.s32.totalorder %s269, %s270
    %p281 = scmp.eq.s32.totalorder %s20, 0
    %p282 = por %p280, %p281
    %p283 = scmp.ne.s32.totalorder %s269, %s270
    %p284 = scmp.eq.s32.totalorder %s21, 3
    %p285 = por %p283, %p284
    %p287 = scmp.ne.s32.totalorder %s270, %s286
    %p288 = scmp.eq.s32.totalorder %s21, 0
    %p289 = por %p287, %p288
    %p290 = scmp.le.s32.totalorder 1, %s15
    %p291 = scmp.lt.s32.totalorder %s15, 5
    %p292 = pnand %p290, %p291
    %p293 = pneg %p292
    // Predicated region
    $region9: #{transformer_with_value_head_forward.2} parent=5 // pred_check
      _
    $region10: #{transformer_with_value_head_forward.2} parent=5 // pred_check_branch
      %295 = sbr.rel (%p292) target = $region12
    $region11: #{transformer_with_value_head_forward.2} parent=5 // pred_region
      %s296 = ssub.s32 %s15, 1
      // Predicated region
      $region13: #{transformer_with_value_head_forward.2} parent=11 // pred_check
        %p297 = pneg %p74
      $region14: #{transformer_with_value_head_forward.2} parent=11 // pred_check_branch
        %299 = sbr.rel (%p297) target = $region16
      $region15: #{transformer_with_value_head_forward.2} parent=11 // pred_region
        _
      $region16: #{transformer_with_value_head_forward.2} parent=11 // pred_fallthru
        _
    $region12: #{transformer_with_value_head_forward.2} parent=5 // pred_fallthru
      _
    %p300 = scmp.lt.s32.totalorder %s15, 4
    // Predicated region
    $region17: #{transformer_with_value_head_forward.2} parent=5 // pred_check
      %p301 = pneg %p300
    $region18: #{transformer_with_value_head_forward.2} parent=5 // pred_check_branch
      %303 = sbr.rel (%p301) target = $region20
    $region19: #{transformer_with_value_head_forward.2} parent=5 // pred_region
      // Predicated region
      $region21: #{transformer_with_value_head_forward.2} parent=19 // pred_check
        %p304 = pneg %p47
      $region22: #{transformer_with_value_head_forward.2} parent=19 // pred_check_branch
        %306 = sbr.rel (%p304) target = $region24
      $region23: #{transformer_with_value_head_forward.2} parent=19 // pred_region
        %p307 = scmp.lt.s32.totalorder %s22, 1
        %s308 = scalar_select %p307, %s22, 1
        %s309 = smul.addr %s308, 8
        %s310 = scalar_lea.vmem %s0, %s309
      $region24: #{transformer_with_value_head_forward.2} parent=19 // pred_fallthru
        _
      // Predicated region
      $region25: #{transformer_with_value_head_forward.2} parent=19 // pred_check
        %p311 = pneg %p94
      $region26: #{transformer_with_value_head_forward.2} parent=19 // pred_check_branch
        %313 = sbr.rel (%p311) target = $region28
      $region27: #{transformer_with_value_head_forward.2} parent=19 // pred_region
        %p314 = scmp.lt.s32.totalorder %s23, 1
        %s315 = scalar_select %p314, %s23, 1
        %s316 = smul.addr %s315, 8
        %s317 = scalar_lea.vmem %s2, %s316
      $region28: #{transformer_with_value_head_forward.2} parent=19 // pred_fallthru
        _
      // Predicated region
      $region29: #{transformer_with_value_head_forward.2} parent=19 // pred_check
        %p318 = pneg %p120
      $region30: #{transformer_with_value_head_forward.2} parent=19 // pred_check_branch
        %320 = sbr.rel (%p318) target = $region32
      $region31: #{transformer_with_value_head_forward.2} parent=19 // pred_region
        %p321 = scmp.lt.s32.totalorder %s23, 1
        %s322 = scalar_select %p321, %s23, 1
        %s323 = smul.addr %s322, 4
        %s324 = smul.addr %s323, 4
        %s325 = scalar_lea.vmem %s3, %s324
      $region32: #{transformer_with_value_head_forward.2} parent=19 // pred_fallthru
        _
      // Predicated region
      $region33: #{transformer_with_value_head_forward.2} parent=19 // pred_check
        %p326 = pneg %p146
      $region34: #{transformer_with_value_head_forward.2} parent=19 // pred_check_branch
        %328 = sbr.rel (%p326) target = $region36
      $region35: #{transformer_with_value_head_forward.2} parent=19 // pred_region
        %p329 = scmp.lt.s32.totalorder %s23, 1
        %s330 = scalar_select %p329, %s23, 1
        %s331 = scalar_lea.vmem %s4, %s330
      $region36: #{transformer_with_value_head_forward.2} parent=19 // pred_fallthru
        _
      // Predicated region
      $region37: #{transformer_with_value_head_forward.2} parent=19 // pred_check
        %p332 = pneg %p172
      $region38: #{transformer_with_value_head_forward.2} parent=19 // pred_check_branch
        %334 = sbr.rel (%p332) target = $region40
      $region39: #{transformer_with_value_head_forward.2} parent=19 // pred_region
        %p335 = scmp.lt.s32.totalorder %s23, 1
        %s336 = scalar_select %p335, %s23, 1
        %s337 = smul.addr %s336, 4
        %s338 = smul.addr %s337, 4
        %s339 = scalar_lea.vmem %s5, %s338
      $region40: #{transformer_with_value_head_forward.2} parent=19 // pred_fallthru
        _
      // Predicated region
      $region41: #{transformer_with_value_head_forward.2} parent=19 // pred_check
        %p340 = pneg %p198
      $region42: #{transformer_with_value_head_forward.2} parent=19 // pred_check_branch
        %342 = sbr.rel (%p340) target = $region44
      $region43: #{transformer_with_value_head_forward.2} parent=19 // pred_region
        %p343 = scmp.lt.s32.totalorder %s23, 1
        %s344 = scalar_select %p343, %s23, 1
        %s345 = smul.addr %s344, 4
        %s346 = smul.addr %s345, 4
        %s347 = scalar_lea.vmem %s6, %s346
      $region44: #{transformer_with_value_head_forward.2} parent=19 // pred_fallthru
        _
      // Predicated region
      $region45: #{transformer_with_value_head_forward.2} parent=19 // pred_check
        %p348 = pneg %p224
      $region46: #{transformer_with_value_head_forward.2} parent=19 // pred_check_branch
        %350 = sbr.rel (%p348) target = $region48
      $region47: #{transformer_with_value_head_forward.2} parent=19 // pred_region
        %p351 = scmp.lt.s32.totalorder %s23, 1
        %s352 = scalar_select %p351, %s23, 1
        %s353 = scalar_lea.vmem %s7, %s352
      $region48: #{transformer_with_value_head_forward.2} parent=19 // pred_fallthru
        _
      // Predicated region
      $region49: #{transformer_with_value_head_forward.2} parent=19 // pred_check
        %p354 = pneg %p250
      $region50: #{transformer_with_value_head_forward.2} parent=19 // pred_check_branch
        %356 = sbr.rel (%p354) target = $region52
      $region51: #{transformer_with_value_head_forward.2} parent=19 // pred_region
        %p357 = scmp.lt.s32.totalorder %s23, 1
        %s358 = scalar_select %p357, %s23, 1
        %s359 = smul.addr %s358, 16
        %s360 = smul.addr %s359, 4
        %s361 = scalar_lea.vmem %s8, %s360
      $region52: #{transformer_with_value_head_forward.2} parent=19 // pred_fallthru
        _
    $region20: #{transformer_with_value_head_forward.2} parent=5 // pred_fallthru
      _
    %p362 = scmp.le.s32.totalorder 1, %s15
    %p363 = scmp.lt.s32.totalorder %s15, 5
    %p364 = pnand %p362, %p363
    %p365 = pneg %p364
    // Predicated region
    $region53: #{transformer_with_value_head_forward.2} parent=5 // pred_check
      _
    $region54: #{transformer_with_value_head_forward.2} parent=5 // pred_check_branch
      %367 = sbr.rel (%p364) target = $region56
    $region55: #{transformer_with_value_head_forward.2} parent=5 // pred_region
      %s368 = ssub.s32 %s15, 1
      %p369 = scmp.lt.s32.totalorder %s24, 1
      %s370 = scalar_select %p369, %s24, 1
      %s371 = smul.addr %s370, 8
      %s372 = scalar_lea.vmem %s0, %s371
      %p373 = pneg %p53
      %p374 = pneg %p50
      %p375 = pneg %p74
      %p376 = pneg %p71
      %p377 = scmp.lt.s32.totalorder %s25, 1
      %s378 = scalar_select %p377, %s25, 1
      %s379 = smul.addr %s378, 8
      %s380 = scalar_lea.vmem %s2, %s379
      %p381 = pneg %p100
      %p382 = pneg %p97
      %p383 = scmp.lt.s32.totalorder %s25, 1
      %s384 = scalar_select %p383, %s25, 1
      %s385 = smul.addr %s384, 4
      %s386 = smul.addr %s385, 4
      %s387 = scalar_lea.vmem %s3, %s386
      %p388 = pneg %p126
      %p389 = pneg %p123
      %p390 = scmp.lt.s32.totalorder %s25, 1
      %s391 = scalar_select %p390, %s25, 1
      %s392 = scalar_lea.vmem %s4, %s391
      %p393 = pneg %p152
      %p394 = pneg %p149
      %p395 = scmp.lt.s32.totalorder %s25, 1
      %s396 = scalar_select %p395, %s25, 1
      %s397 = smul.addr %s396, 4
      %s398 = smul.addr %s397, 4
      %s399 = scalar_lea.vmem %s5, %s398
      %p400 = pneg %p178
      %p401 = pneg %p175
      %p402 = scmp.lt.s32.totalorder %s25, 1
      %s403 = scalar_select %p402, %s25, 1
      %s404 = smul.addr %s403, 4
      %s405 = smul.addr %s404, 4
      %s406 = scalar_lea.vmem %s6, %s405
      %p407 = pneg %p204
      %p408 = pneg %p201
      %p409 = scmp.lt.s32.totalorder %s25, 1
      %s410 = scalar_select %p409, %s25, 1
      %s411 = scalar_lea.vmem %s7, %s410
      %p412 = pneg %p230
      %p413 = pneg %p227
      %p414 = scmp.lt.s32.totalorder %s25, 1
      %s415 = scalar_select %p414, %s25, 1
      %s416 = smul.addr %s415, 16
      %s417 = smul.addr %s416, 4
      %s418 = scalar_lea.vmem %s8, %s417
      %p419 = pneg %p256
      %p420 = pneg %p253
      %p421 = pneg %p282
      %p422 = pneg %p279
      %p423 = scmp.lt.s32.totalorder %s24, 1
      %s424 = scalar_select %p423, %s24, 1
      %s425 = smul.addr %s424, 8
      %s426 = scalar_lea.vmem %s9, %s425
      %p427 = scmp.lt.s32.totalorder %s24, 1
      %s428 = scalar_select %p427, %s24, 1
      %s429 = smul.addr %s428, 8
      %s430 = scalar_lea.vmem %s0, %s429
      %p431 = scmp.lt.s32.totalorder %s25, 1
      %s432 = scalar_select %p431, %s25, 1
      %s433 = smul.addr %s432, 8
      %s434 = scalar_lea.vmem %s2, %s433
      %p435 = scmp.lt.s32.totalorder %s25, 1
      %s436 = scalar_select %p435, %s25, 1
      %s437 = smul.addr %s436, 4
      %s438 = smul.addr %s437, 4
      %s439 = scalar_lea.vmem %s3, %s438
      %p440 = scmp.lt.s32.totalorder %s25, 1
      %s441 = scalar_select %p440, %s25, 1
      %s442 = scalar_lea.vmem %s4, %s441
      %p443 = scmp.lt.s32.totalorder %s25, 1
      %s444 = scalar_select %p443, %s25, 1
      %s445 = smul.addr %s444, 4
      %s446 = smul.addr %s445, 4
      %s447 = scalar_lea.vmem %s5, %s446
      %p448 = scmp.lt.s32.totalorder %s25, 1
      %s449 = scalar_select %p448, %s25, 1
      %s450 = smul.addr %s449, 4
      %s451 = smul.addr %s450, 4
      %s452 = scalar_lea.vmem %s6, %s451
      %p453 = scmp.lt.s32.totalorder %s25, 1
      %s454 = scalar_select %p453, %s25, 1
      %s455 = scalar_lea.vmem %s7, %s454
      %p456 = scmp.lt.s32.totalorder %s25, 1
      %s457 = scalar_select %p456, %s25, 1
      %s458 = smul.addr %s457, 16
      %s459 = smul.addr %s458, 4
      %s460 = scalar_lea.vmem %s8, %s459
      %p461 = scmp.lt.s32.totalorder %s24, 1
      %s462 = scalar_select %p461, %s24, 1
      %s463 = smul.addr %s462, 8
      %s464 = scalar_lea.vmem %s9, %s463
      %p466 = scmp.eq.s32.totalorder %s25, 0
      // Predicated region
      $region57: #{transformer_with_value_head_forward.2} parent=55 // pred_check
        %p467 = pneg %p466
      $region58: #{transformer_with_value_head_forward.2} parent=55 // pred_check_branch
        %469 = sbr.rel (%p467) target = $region60
      $region59: #{transformer_with_value_head_forward.2} parent=55 // pred_region
        %v470 = vld [vmem:[%s430] sm:$0xff]
        %vm471 = vcmask 261120
        %472 = vst.msk [vmem:[#allocation2] sm:$0xff] %vm471, %v470
      $region60: #{transformer_with_value_head_forward.2} parent=55 // pred_fallthru
        _
      %v473 = vld [vmem:[#allocation2] sm:$0xff]
      %v474 = vld [vmem:[%s434] sm:$0x3f]
      %vm475 = vcmask 261120
      %v476 = vsel %vm475, %v473, 0.0
      %477 = vadd.xlane.f32.xlu0 %v476
      %v478 = vpop.xlane.xlu0 %477
      %v479 = vrcp.pop 32.0
      %v480 = vmul.f32 %v478, %v479
      %v481 = vsub.f32 %v473, %v480
      %v482 = vmul.f32 %v481, %v481
      %v483 = vsel %vm475, %v482, 0.0
      %484 = vadd.xlane.f32.xlu0 %v483
      %v485 = vpop.xlane.xlu0 %484
      %v486 = vmul.f32 %v485, %v479
      %v487 = vadd.f32 %v486, 1e-05
      %v488 = vrsqrt.pop %v487
      %v489 = vmul.f32 %v481, %v488
      %v490 = vlaneseq
      %v491 = vshrl.u32 %v490, 7
      %v492 = vsub.s32 0, %v491
      %v493 = vrot.slane %v474, %v492
      %v494 = vmul.f32 %v489, %v493
      %v495 = vlaneseq
      %v496 = vshrl.u32 %v495, 7
      %v497 = vsub.s32 1, %v496
      %v498 = vrot.slane %v474, %v497
      %v499 = vadd.f32 %v494, %v498
      %v500 = vpack.c.bf16 %v499, %v499
      %v501 = vld [vmem:[%s439] sm:$0xf]
      %v502 = vld [vmem:[%s439 + $0x4] sm:$0xf]
      %v503 = vld [vmem:[%s439 + $0x8] sm:$0xf]
      %v504 = vld [vmem:[%s439 + $0xc] sm:$0xf]
      %v505 = vld [vmem:[%s442] sm:$0x1]
      %v507 = vlaneseq
      %v508 = vshrl.u32 %v507, 7
      %v509 = vsub.s32 0, %v508
      %v510 = vrot.slane %v505, %v509
      %v516 = vunpack.c.l.b16 %v501
      %v517 = vunpack.c.l.b16 %v502
      %v518 = vunpack.c.l.b16 %v503
      %v519 = vunpack.c.l.b16 %v504
      %v520 = vpack.c.b16 %v517, %v516
      %v521 = vpack.c.b16 %v519, %v518
      %v525 = vsel %vm475, %v500, 0
      %527 = vmatprep.subr.bf16.mxu0 0
      %528 = vmatpush1.bf16.msra.mxu0 %v520
      %529 = vmatprep.subr.bf16.mxu0 0
      %530 = vmatpush1.bf16.msra.mxu0 %v521
      %531 = vmatprep.subr.bf16.mxu0 0
      %532 = vmatpush1.bf16.msra.mxu0 0
      %533 = vmatprep.subr.bf16.mxu0 0
      %534 = vmatpush1.bf16.msra.mxu0 0
      %535 = vmatprep.subr.bf16.mxu0 0
      %536 = vmatpush1.bf16.msra.mxu0 0
      %537 = vmatprep.subr.bf16.mxu0 0
      %538 = vmatpush1.bf16.msra.mxu0 0
      %539 = vmatprep.subr.bf16.mxu0 0
      %540 = vmatpush1.bf16.msra.mxu0 0
      %541 = vmatprep.subr.bf16.mxu0 0
      %542 = vmatpush1.bf16.msra.mxu0 0
      %543 = vmatprep.subr.bf16.mxu0 0
      %544 = vmatpush1.bf16.msra.mxu0 0
      %545 = vmatprep.subr.bf16.mxu0 0
      %546 = vmatpush1.bf16.msra.mxu0 0
      %547 = vmatprep.subr.bf16.mxu0 0
      %548 = vmatpush1.bf16.msra.mxu0 0
      %549 = vmatprep.subr.bf16.mxu0 0
      %550 = vmatpush1.bf16.msra.mxu0 0
      %551 = vmatprep.subr.bf16.mxu0 0
      %552 = vmatpush1.bf16.msra.mxu0 0
      %553 = vmatprep.subr.bf16.mxu0 0
      %554 = vmatpush1.bf16.msra.mxu0 0
      %555 = vmatprep.subr.bf16.mxu0 0
      %556 = vmatpush1.bf16.msra.mxu0 0
      %557 = vmatprep.subr.bf16.mxu0 0
      %558 = vmatpush1.bf16.msra.mxu0 0
      %559 = vmatprep.mubr.bf16.mxu0 0
      %560 = vmatmul.mubr.bf16.gmra.mrb[0].mxu0 %v525
      %v561 = vpop.f32.mrb[0].mxu0
      %v562 = vadd.f32 %v510, %v561
      %v563 = vpop.f32.mrb[0].mxu0
      %v564 = vpop.f32.mrb[0].mxu0
      %v565 = vpop.f32.mrb[0].mxu0
      %566 = vdwg.mxu0
      %v567 = vld [vmem:[%s1] sm:$0xff]
      %v568 = vpack.c.bf16 %v562, %v562
      %570 = vrot.lane.b32.xlu0 %v568, 96
      %v571 = vpop.permute.xlu0 %570
      %vm572 = vcmask 64512
      %v574 = vsel %vm572, %v568, 0
      %v577 = vsel %vm572, %v571, 0
      %579 = vmatprep.subr.bf16.mxu0 0
      %580 = vmatpush1.bf16.xpose.msra.mxu0 %v577
      %581 = vmatprep.subr.bf16.mxu0 0
      %582 = vmatpush1.bf16.xpose.msra.mxu0 0
      %583 = vmatprep.subr.bf16.mxu0 0
      %584 = vmatpush1.bf16.xpose.msra.mxu0 0
      %585 = vmatprep.subr.bf16.mxu0 0
      %586 = vmatpush1.bf16.xpose.msra.mxu0 0
      %587 = vmatprep.subr.bf16.mxu0 0
      %588 = vmatpush1.bf16.xpose.msra.mxu0 0
      %589 = vmatprep.subr.bf16.mxu0 0
      %590 = vmatpush1.bf16.xpose.msra.mxu0 0
      %591 = vmatprep.subr.bf16.mxu0 0
      %592 = vmatpush1.bf16.xpose.msra.mxu0 0
      %593 = vmatprep.subr.bf16.mxu0 0
      %594 = vmatpush1.bf16.xpose.msra.mxu0 0
      %595 = vmatprep.subr.bf16.mxu0 0
      %596 = vmatpush1.bf16.xpose.msra.mxu0 0
      %597 = vmatprep.subr.bf16.mxu0 0
      %598 = vmatpush1.bf16.xpose.msra.mxu0 0
      %599 = vmatprep.subr.bf16.mxu0 0
      %600 = vmatpush1.bf16.xpose.msra.mxu0 0
      %601 = vmatprep.subr.bf16.mxu0 0
      %602 = vmatpush1.bf16.xpose.msra.mxu0 0
      %603 = vmatprep.subr.bf16.mxu0 0
      %604 = vmatpush1.bf16.xpose.msra.mxu0 0
      %605 = vmatprep.subr.bf16.mxu0 0
      %606 = vmatpush1.bf16.xpose.msra.mxu0 0
      %607 = vmatprep.subr.bf16.mxu0 0
      %608 = vmatpush1.bf16.xpose.msra.mxu0 0
      %609 = vmatprep.subr.bf16.mxu0 0
      %610 = vmatpush1.bf16.xpose.msra.mxu0 0
      %611 = vmatprep.mubr.bf16.mxu0 0
      %612 = vmatmul.mubr.bf16.gmra.mrb[0].mxu0 %v574
      %v613 = vpop.f32.mrb[0].mxu0
      %v614 = vadd.f32 %v567, %v613
      %v615 = vpop.f32.mrb[0].mxu0
      %v616 = vpop.f32.mrb[0].mxu0
      %v617 = vpop.f32.mrb[0].mxu0
      %618 = vdwg.mxu0
      %v619 = vsel %vm572, %v614, -inf
      %620 = vmax.xlane.f32.xlu0 %v619
      %v621 = vpop.xlane.xlu0 %620
      %v622 = vsub.f32 %v614, %v621
      %v623 = vmul.f32 %v622, 1.442695
      %v624 = vpow.pop %v623
      %v625 = vsel %vm572, %v624, 0.0
      %626 = vadd.xlane.f32.xlu0 %v625
      %v627 = vpop.xlane.xlu0 %626
      %v628 = vrcp.pop %v627
      %v629 = vmul.f32 %v624, %v628
      %v630 = vpack.c.bf16 %v629, %v629
      %631 = vrot.lane.b32.xlu0 %v568, 64
      %v632 = vpop.permute.xlu0 %631
      %v634 = vsel %vm572, %v630, 0
      %vm636 = vcmask 1043456
      %v638 = vsel %vm636, %v632, 0
      %640 = vmatprep.subr.bf16.mxu0 0
      %641 = vmatpush1.bf16.msra.mxu0 %v638
      %642 = vmatprep.subr.bf16.mxu0 0
      %643 = vmatpush1.bf16.msra.mxu0 0
      %644 = vmatprep.subr.bf16.mxu0 0
      %645 = vmatpush1.bf16.msra.mxu0 0
      %646 = vmatprep.subr.bf16.mxu0 0
      %647 = vmatpush1.bf16.msra.mxu0 0
      %648 = vmatprep.subr.bf16.mxu0 0
      %649 = vmatpush1.bf16.msra.mxu0 0
      %650 = vmatprep.subr.bf16.mxu0 0
      %651 = vmatpush1.bf16.msra.mxu0 0
      %652 = vmatprep.subr.bf16.mxu0 0
      %653 = vmatpush1.bf16.msra.mxu0 0
      %654 = vmatprep.subr.bf16.mxu0 0
      %655 = vmatpush1.bf16.msra.mxu0 0
      %656 = vmatprep.subr.bf16.mxu0 0
      %657 = vmatpush1.bf16.msra.mxu0 0
      %658 = vmatprep.subr.bf16.mxu0 0
      %659 = vmatpush1.bf16.msra.mxu0 0
      %660 = vmatprep.subr.bf16.mxu0 0
      %661 = vmatpush1.bf16.msra.mxu0 0
      %662 = vmatprep.subr.bf16.mxu0 0
      %663 = vmatpush1.bf16.msra.mxu0 0
      %664 = vmatprep.subr.bf16.mxu0 0
      %665 = vmatpush1.bf16.msra.mxu0 0
      %666 = vmatprep.subr.bf16.mxu0 0
      %667 = vmatpush1.bf16.msra.mxu0 0
      %668 = vmatprep.subr.bf16.mxu0 0
      %669 = vmatpush1.bf16.msra.mxu0 0
      %670 = vmatprep.subr.bf16.mxu0 0
      %671 = vmatpush1.bf16.msra.mxu0 0
      %672 = vmatprep.mubr.bf16.mxu0 0
      %673 = vmatmul.mubr.bf16.gmra.mrb[0].mxu0 %v634
      %v674 = vpop.f32.mrb[0].mxu0
      %v675 = vadd.f32 0.0, %v674
      %v676 = vpop.f32.mrb[0].mxu0
      %v677 = vpop.f32.mrb[0].mxu0
      %v678 = vpop.f32.mrb[0].mxu0
      %679 = vdwg.mxu0
      %680 = vrot.lane.b32.xlu0 %v568, 120
      %v681 = vpop.permute.xlu0 %680
      %682 = vrot.lane.b32.xlu0 %v568, 88
      %v683 = vpop.permute.xlu0 %682
      %v685 = vsel %vm572, %v681, 0
      %v688 = vsel %vm572, %v683, 0
      %690 = vmatprep.subr.bf16.mxu0 0
      %691 = vmatpush1.bf16.xpose.msra.mxu0 %v688
      %692 = vmatprep.subr.bf16.mxu0 0
      %693 = vmatpush1.bf16.xpose.msra.mxu0 0
      %694 = vmatprep.subr.bf16.mxu0 0
      %695 = vmatpush1.bf16.xpose.msra.mxu0 0
      %696 = vmatprep.subr.bf16.mxu0 0
      %697 = vmatpush1.bf16.xpose.msra.mxu0 0
      %698 = vmatprep.subr.bf16.mxu0 0
      %699 = vmatpush1.bf16.xpose.msra.mxu0 0
      %700 = vmatprep.subr.bf16.mxu0 0
      %701 = vmatpush1.bf16.xpose.msra.mxu0 0
      %702 = vmatprep.subr.bf16.mxu0 0
      %703 = vmatpush1.bf16.xpose.msra.mxu0 0
      %704 = vmatprep.subr.bf16.mxu0 0
      %705 = vmatpush1.bf16.xpose.msra.mxu0 0
      %706 = vmatprep.subr.bf16.mxu0 0
      %707 = vmatpush1.bf16.xpose.msra.mxu0 0
      %708 = vmatprep.subr.bf16.mxu0 0
      %709 = vmatpush1.bf16.xpose.msra.mxu0 0
      %710 = vmatprep.subr.bf16.mxu0 0
      %711 = vmatpush1.bf16.xpose.msra.mxu0 0
      %712 = vmatprep.subr.bf16.mxu0 0
      %713 = vmatpush1.bf16.xpose.msra.mxu0 0
      %714 = vmatprep.subr.bf16.mxu0 0
      %715 = vmatpush1.bf16.xpose.msra.mxu0 0
      %716 = vmatprep.subr.bf16.mxu0 0
      %717 = vmatpush1.bf16.xpose.msra.mxu0 0
      %718 = vmatprep.subr.bf16.mxu0 0
      %719 = vmatpush1.bf16.xpose.msra.mxu0 0
      %720 = vmatprep.subr.bf16.mxu0 0
      %721 = vmatpush1.bf16.xpose.msra.mxu0 0
      %722 = vmatprep.mubr.bf16.mxu0 0
      %723 = vmatmul.mubr.bf16.gmra.mrb[0].mxu0 %v685
      %v724 = vpop.f32.mrb[0].mxu0
      %v725 = vadd.f32 %v567, %v724
      %v726 = vpop.f32.mrb[0].mxu0
      %v727 = vpop.f32.mrb[0].mxu0
      %v728 = vpop.f32.mrb[0].mxu0
      %729 = vdwg.mxu0
      %v730 = vsel %vm572, %v725, -inf
      %731 = vmax.xlane.f32.xlu0 %v730
      %v732 = vpop.xlane.xlu0 %731
      %v733 = vsub.f32 %v725, %v732
      %v734 = vmul.f32 %v733, 1.442695
      %v735 = vpow.pop %v734
      %v736 = vsel %vm572, %v735, 0.0
      %737 = vadd.xlane.f32.xlu0 %v736
      %v738 = vpop.xlane.xlu0 %737
      %v739 = vrcp.pop %v738
      %v740 = vmul.f32 %v735, %v739
      %v741 = vpack.c.bf16 %v740, %v740
      %742 = vrot.lane.b32.xlu0 %v568, 56
      %v743 = vpop.permute.xlu0 %742
      %v745 = vsel %vm572, %v741, 0
      %v748 = vsel %vm636, %v743, 0
      %750 = vmatprep.subr.bf16.mxu0 0
      %751 = vmatpush1.bf16.msra.mxu0 %v748
      %752 = vmatprep.subr.bf16.mxu0 0
      %753 = vmatpush1.bf16.msra.mxu0 0
      %754 = vmatprep.subr.bf16.mxu0 0
      %755 = vmatpush1.bf16.msra.mxu0 0
      %756 = vmatprep.subr.bf16.mxu0 0
      %757 = vmatpush1.bf16.msra.mxu0 0
      %758 = vmatprep.subr.bf16.mxu0 0
      %759 = vmatpush1.bf16.msra.mxu0 0
      %760 = vmatprep.subr.bf16.mxu0 0
      %761 = vmatpush1.bf16.msra.mxu0 0
      %762 = vmatprep.subr.bf16.mxu0 0
      %763 = vmatpush1.bf16.msra.mxu0 0
      %764 = vmatprep.subr.bf16.mxu0 0
      %765 = vmatpush1.bf16.msra.mxu0 0
      %766 = vmatprep.subr.bf16.mxu0 0
      %767 = vmatpush1.bf16.msra.mxu0 0
      %768 = vmatprep.subr.bf16.mxu0 0
      %769 = vmatpush1.bf16.msra.mxu0 0
      %770 = vmatprep.subr.bf16.mxu0 0
      %771 = vmatpush1.bf16.msra.mxu0 0
      %772 = vmatprep.subr.bf16.mxu0 0
      %773 = vmatpush1.bf16.msra.mxu0 0
      %774 = vmatprep.subr.bf16.mxu0 0
      %775 = vmatpush1.bf16.msra.mxu0 0
      %776 = vmatprep.subr.bf16.mxu0 0
      %777 = vmatpush1.bf16.msra.mxu0 0
      %778 = vmatprep.subr.bf16.mxu0 0
      %779 = vmatpush1.bf16.msra.mxu0 0
      %780 = vmatprep.subr.bf16.mxu0 0
      %781 = vmatpush1.bf16.msra.mxu0 0
      %782 = vmatprep.mubr.bf16.mxu0 0
      %783 = vmatmul.mubr.bf16.gmra.mrb[0].mxu0 %v745
      %v784 = vpop.f32.mrb[0].mxu0
      %v785 = vadd.f32 0.0, %v784
      %v786 = vpop.f32.mrb[0].mxu0
      %v787 = vpop.f32.mrb[0].mxu0
      %v788 = vpop.f32.mrb[0].mxu0
      %789 = vdwg.mxu0
      %790 = vrot.lane.b32.xlu0 %v568, 112
      %v791 = vpop.permute.xlu0 %790
      %792 = vrot.lane.b32.xlu0 %v568, 80
      %v793 = vpop.permute.xlu0 %792
      %v795 = vsel %vm572, %v791, 0
      %v798 = vsel %vm572, %v793, 0
      %800 = vmatprep.subr.bf16.mxu0 0
      %801 = vmatpush1.bf16.xpose.msra.mxu0 %v798
      %802 = vmatprep.subr.bf16.mxu0 0
      %803 = vmatpush1.bf16.xpose.msra.mxu0 0
      %804 = vmatprep.subr.bf16.mxu0 0
      %805 = vmatpush1.bf16.xpose.msra.mxu0 0
      %806 = vmatprep.subr.bf16.mxu0 0
      %807 = vmatpush1.bf16.xpose.msra.mxu0 0
      %808 = vmatprep.subr.bf16.mxu0 0
      %809 = vmatpush1.bf16.xpose.msra.mxu0 0
      %810 = vmatprep.subr.bf16.mxu0 0
      %811 = vmatpush1.bf16.xpose.msra.mxu0 0
      %812 = vmatprep.subr.bf16.mxu0 0
      %813 = vmatpush1.bf16.xpose.msra.mxu0 0
      %814 = vmatprep.subr.bf16.mxu0 0
      %815 = vmatpush1.bf16.xpose.msra.mxu0 0
      %816 = vmatprep.subr.bf16.mxu0 0
      %817 = vmatpush1.bf16.xpose.msra.mxu0 0
      %818 = vmatprep.subr.bf16.mxu0 0
      %819 = vmatpush1.bf16.xpose.msra.mxu0 0
      %820 = vmatprep.subr.bf16.mxu0 0
      %821 = vmatpush1.bf16.xpose.msra.mxu0 0
      %822 = vmatprep.subr.bf16.mxu0 0
      %823 = vmatpush1.bf16.xpose.msra.mxu0 0
      %824 = vmatprep.subr.bf16.mxu0 0
      %825 = vmatpush1.bf16.xpose.msra.mxu0 0
      %826 = vmatprep.subr.bf16.mxu0 0
      %827 = vmatpush1.bf16.xpose.msra.mxu0 0
      %828 = vmatprep.subr.bf16.mxu0 0
      %829 = vmatpush1.bf16.xpose.msra.mxu0 0
      %830 = vmatprep.subr.bf16.mxu0 0
      %831 = vmatpush1.bf16.xpose.msra.mxu0 0
      %832 = vmatprep.mubr.bf16.mxu0 0
      %833 = vmatmul.mubr.bf16.gmra.mrb[0].mxu0 %v795
      %v834 = vpop.f32.mrb[0].mxu0
      %v835 = vadd.f32 %v567, %v834
      %v836 = vpop.f32.mrb[0].mxu0
      %v837 = vpop.f32.mrb[0].mxu0
      %v838 = vpop.f32.mrb[0].mxu0
      %839 = vdwg.mxu0
      %v840 = vsel %vm572, %v835, -inf
      %841 = vmax.xlane.f32.xlu0 %v840
      %v842 = vpop.xlane.xlu0 %841
      %v843 = vsub.f32 %v835, %v842
      %v844 = vmul.f32 %v843, 1.442695
      %v845 = vpow.pop %v844
      %v846 = vsel %vm572, %v845, 0.0
      %847 = vadd.xlane.f32.xlu0 %v846
      %v848 = vpop.xlane.xlu0 %847
      %v849 = vrcp.pop %v848
      %v850 = vmul.f32 %v845, %v849
      %v851 = vpack.c.bf16 %v850, %v850
      %852 = vrot.lane.b32.xlu0 %v568, 48
      %v853 = vpop.permute.xlu0 %852
      %v855 = vsel %vm572, %v851, 0
      %v858 = vsel %vm636, %v853, 0
      %860 = vmatprep.subr.bf16.mxu0 0
      %861 = vmatpush1.bf16.msra.mxu0 %v858
      %862 = vmatprep.subr.bf16.mxu0 0
      %863 = vmatpush1.bf16.msra.mxu0 0
      %864 = vmatprep.subr.bf16.mxu0 0
      %865 = vmatpush1.bf16.msra.mxu0 0
      %866 = vmatprep.subr.bf16.mxu0 0
      %867 = vmatpush1.bf16.msra.mxu0 0
      %868 = vmatprep.subr.bf16.mxu0 0
      %869 = vmatpush1.bf16.msra.mxu0 0
      %870 = vmatprep.subr.bf16.mxu0 0
      %871 = vmatpush1.bf16.msra.mxu0 0
      %872 = vmatprep.subr.bf16.mxu0 0
      %873 = vmatpush1.bf16.msra.mxu0 0
      %874 = vmatprep.subr.bf16.mxu0 0
      %875 = vmatpush1.bf16.msra.mxu0 0
      %876 = vmatprep.subr.bf16.mxu0 0
      %877 = vmatpush1.bf16.msra.mxu0 0
      %878 = vmatprep.subr.bf16.mxu0 0
      %879 = vmatpush1.bf16.msra.mxu0 0
      %880 = vmatprep.subr.bf16.mxu0 0
      %881 = vmatpush1.bf16.msra.mxu0 0
      %882 = vmatprep.subr.bf16.mxu0 0
      %883 = vmatpush1.bf16.msra.mxu0 0
      %884 = vmatprep.subr.bf16.mxu0 0
      %885 = vmatpush1.bf16.msra.mxu0 0
      %886 = vmatprep.subr.bf16.mxu0 0
      %887 = vmatpush1.bf16.msra.mxu0 0
      %888 = vmatprep.subr.bf16.mxu0 0
      %889 = vmatpush1.bf16.msra.mxu0 0
      %890 = vmatprep.subr.bf16.mxu0 0
      %891 = vmatpush1.bf16.msra.mxu0 0
      %892 = vmatprep.mubr.bf16.mxu0 0
      %893 = vmatmul.mubr.bf16.gmra.mrb[0].mxu0 %v855
      %v894 = vpop.f32.mrb[0].mxu0
      %v895 = vadd.f32 0.0, %v894
      %v896 = vpop.f32.mrb[0].mxu0
      %v897 = vpop.f32.mrb[0].mxu0
      %v898 = vpop.f32.mrb[0].mxu0
      %899 = vdwg.mxu0
      %900 = vrot.lane.b32.xlu0 %v568, 104
      %v901 = vpop.permute.xlu0 %900
      %902 = vrot.lane.b32.xlu0 %v568, 72
      %v903 = vpop.permute.xlu0 %902
      %v905 = vsel %vm572, %v901, 0
      %v908 = vsel %vm572, %v903, 0
      %910 = vmatprep.subr.bf16.mxu0 0
      %911 = vmatpush1.bf16.xpose.msra.mxu0 %v908
      %912 = vmatprep.subr.bf16.mxu0 0
      %913 = vmatpush1.bf16.xpose.msra.mxu0 0
      %914 = vmatprep.subr.bf16.mxu0 0
      %915 = vmatpush1.bf16.xpose.msra.mxu0 0
      %916 = vmatprep.subr.bf16.mxu0 0
      %917 = vmatpush1.bf16.xpose.msra.mxu0 0
      %918 = vmatprep.subr.bf16.mxu0 0
      %919 = vmatpush1.bf16.xpose.msra.mxu0 0
      %920 = vmatprep.subr.bf16.mxu0 0
      %921 = vmatpush1.bf16.xpose.msra.mxu0 0
      %922 = vmatprep.subr.bf16.mxu0 0
      %923 = vmatpush1.bf16.xpose.msra.mxu0 0
      %924 = vmatprep.subr.bf16.mxu0 0
      %925 = vmatpush1.bf16.xpose.msra.mxu0 0
      %926 = vmatprep.subr.bf16.mxu0 0
      %927 = vmatpush1.bf16.xpose.msra.mxu0 0
      %928 = vmatprep.subr.bf16.mxu0 0
      %929 = vmatpush1.bf16.xpose.msra.mxu0 0
      %930 = vmatprep.subr.bf16.mxu0 0
      %931 = vmatpush1.bf16.xpose.msra.mxu0 0
      %932 = vmatprep.subr.bf16.mxu0 0
      %933 = vmatpush1.bf16.xpose.msra.mxu0 0
      %934 = vmatprep.subr.bf16.mxu0 0
      %935 = vmatpush1.bf16.xpose.msra.mxu0 0
      %936 = vmatprep.subr.bf16.mxu0 0
      %937 = vmatpush1.bf16.xpose.msra.mxu0 0
      %938 = vmatprep.subr.bf16.mxu0 0
      %939 = vmatpush1.bf16.xpose.msra.mxu0 0
      %940 = vmatprep.subr.bf16.mxu0 0
      %941 = vmatpush1.bf16.xpose.msra.mxu0 0
      %942 = vmatprep.mubr.bf16.mxu0 0
      %943 = vmatmul.mubr.bf16.gmra.mrb[0].mxu0 %v905
      %v944 = vpop.f32.mrb[0].mxu0
      %v945 = vadd.f32 %v567, %v944
      %v946 = vpop.f32.mrb[0].mxu0
      %v947 = vpop.f32.mrb[0].mxu0
      %v948 = vpop.f32.mrb[0].mxu0
      %949 = vdwg.mxu0
      %v950 = vsel %vm572, %v945, -inf
      %951 = vmax.xlane.f32.xlu0 %v950
      %v952 = vpop.xlane.xlu0 %951
      %v953 = vsub.f32 %v945, %v952
      %v954 = vmul.f32 %v953, 1.442695
      %v955 = vpow.pop %v954
      %v956 = vsel %vm572, %v955, 0.0
      %957 = vadd.xlane.f32.xlu0 %v956
      %v958 = vpop.xlane.xlu0 %957
      %v959 = vrcp.pop %v958
      %v960 = vmul.f32 %v955, %v959
      %v961 = vpack.c.bf16 %v960, %v960
      %962 = vrot.lane.b32.xlu0 %v568, 40
      %v963 = vpop.permute.xlu0 %962
      %v965 = vsel %vm572, %v961, 0
      %v968 = vsel %vm636, %v963, 0
      %970 = vmatprep.subr.bf16.mxu0 0
      %971 = vmatpush1.bf16.msra.mxu0 %v968
      %972 = vmatprep.subr.bf16.mxu0 0
      %973 = vmatpush1.bf16.msra.mxu0 0
      %974 = vmatprep.subr.bf16.mxu0 0
      %975 = vmatpush1.bf16.msra.mxu0 0
      %976 = vmatprep.subr.bf16.mxu0 0
      %977 = vmatpush1.bf16.msra.mxu0 0
      %978 = vmatprep.subr.bf16.mxu0 0
      %979 = vmatpush1.bf16.msra.mxu0 0
      %980 = vmatprep.subr.bf16.mxu0 0
      %981 = vmatpush1.bf16.msra.mxu0 0
      %982 = vmatprep.subr.bf16.mxu0 0
      %983 = vmatpush1.bf16.msra.mxu0 0
      %984 = vmatprep.subr.bf16.mxu0 0
      %985 = vmatpush1.bf16.msra.mxu0 0
      %986 = vmatprep.subr.bf16.mxu0 0
      %987 = vmatpush1.bf16.msra.mxu0 0
      %988 = vmatprep.subr.bf16.mxu0 0
      %989 = vmatpush1.bf16.msra.mxu0 0
      %990 = vmatprep.subr.bf16.mxu0 0
      %991 = vmatpush1.bf16.msra.mxu0 0
      %992 = vmatprep.subr.bf16.mxu0 0
      %993 = vmatpush1.bf16.msra.mxu0 0
      %994 = vmatprep.subr.bf16.mxu0 0
      %995 = vmatpush1.bf16.msra.mxu0 0
      %996 = vmatprep.subr.bf16.mxu0 0
      %997 = vmatpush1.bf16.msra.mxu0 0
      %998 = vmatprep.subr.bf16.mxu0 0
      %999 = vmatpush1.bf16.msra.mxu0 0
      %1000 = vmatprep.subr.bf16.mxu0 0
      %1001 = vmatpush1.bf16.msra.mxu0 0
      %1002 = vmatprep.mubr.bf16.mxu0 0
      %1003 = vmatmul.mubr.bf16.gmra.mrb[0].mxu0 %v965
      %v1004 = vpop.f32.mrb[0].mxu0
      %v1005 = vadd.f32 0.0, %v1004
      %v1006 = vpop.f32.mrb[0].mxu0
      %v1007 = vpop.f32.mrb[0].mxu0
      %v1008 = vpop.f32.mrb[0].mxu0
      %1009 = vdwg.mxu0
      %1011 = vrot.lane.b32.xlu0 %v785, 8
      %v1012 = vpop.permute.xlu0 %1011
      %1015 = vrot.lane.b32.xlu0 %v895, 16
      %v1016 = vpop.permute.xlu0 %1015
      %1019 = vrot.lane.b32.xlu0 %v1005, 24
      %v1020 = vpop.permute.xlu0 %1019
      %v1022 = vsel %vm572, %v675, %v1012
      %vm1023 = vcmask 130048
      %v1024 = vsel %vm1023, %v1022, %v1016
      %vm1025 = vcmask 195584
      %v1026 = vsel %vm1025, %v1024, %v1020
      %v1027 = vpack.c.bf16 %v1026, %v1026
      %v1028 = vld [vmem:[%s447] sm:$0xf]
      %v1029 = vld [vmem:[%s447 + $0x4] sm:$0xf]
      %v1030 = vld [vmem:[%s447 + $0x8] sm:$0xf]
      %v1031 = vld [vmem:[%s447 + $0xc] sm:$0xf]
      %v1036 = vunpack.c.l.b16 %v1028
      %v1037 = vunpack.c.l.b16 %v1029
      %v1038 = vunpack.c.l.b16 %v1030
      %v1039 = vunpack.c.l.b16 %v1031
      %v1040 = vpack.c.b16 %v1037, %v1036
      %v1041 = vpack.c.b16 %v1039, %v1038
      %v1045 = vsel %vm475, %v1027, 0
      %1047 = vmatprep.subr.bf16.mxu0 0
      %1048 = vmatpush1.bf16.msra.mxu0 %v1040
      %1049 = vmatprep.subr.bf16.mxu0 0
      %1050 = vmatpush1.bf16.msra.mxu0 %v1041
      %1051 = vmatprep.subr.bf16.mxu0 0
      %1052 = vmatpush1.bf16.msra.mxu0 0
      %1053 = vmatprep.subr.bf16.mxu0 0
      %1054 = vmatpush1.bf16.msra.mxu0 0
      %1055 = vmatprep.subr.bf16.mxu0 0
      %1056 = vmatpush1.bf16.msra.mxu0 0
      %1057 = vmatprep.subr.bf16.mxu0 0
      %1058 = vmatpush1.bf16.msra.mxu0 0
      %1059 = vmatprep.subr.bf16.mxu0 0
      %1060 = vmatpush1.bf16.msra.mxu0 0
      %1061 = vmatprep.subr.bf16.mxu0 0
      %1062 = vmatpush1.bf16.msra.mxu0 0
      %1063 = vmatprep.subr.bf16.mxu0 0
      %1064 = vmatpush1.bf16.msra.mxu0 0
      %1065 = vmatprep.subr.bf16.mxu0 0
      %1066 = vmatpush1.bf16.msra.mxu0 0
      %1067 = vmatprep.subr.bf16.mxu0 0
      %1068 = vmatpush1.bf16.msra.mxu0 0
      %1069 = vmatprep.subr.bf16.mxu0 0
      %1070 = vmatpush1.bf16.msra.mxu0 0
      %1071 = vmatprep.subr.bf16.mxu0 0
      %1072 = vmatpush1.bf16.msra.mxu0 0
      %1073 = vmatprep.subr.bf16.mxu0 0
      %1074 = vmatpush1.bf16.msra.mxu0 0
      %1075 = vmatprep.subr.bf16.mxu0 0
      %1076 = vmatpush1.bf16.msra.mxu0 0
      %1077 = vmatprep.subr.bf16.mxu0 0
      %1078 = vmatpush1.bf16.msra.mxu0 0
      %1079 = vmatprep.mubr.bf16.mxu0 0
      %1080 = vmatmul.mubr.bf16.gmra.mrb[0].mxu0 %v1045
      %v1081 = vpop.f32.mrb[0].mxu0
      %v1082 = vadd.f32 0.0, %v1081
      %v1083 = vpop.f32.mrb[0].mxu0
      %v1084 = vpop.f32.mrb[0].mxu0
      %v1085 = vpop.f32.mrb[0].mxu0
      %1086 = vdwg.mxu0
      %v1087 = vadd.f32 %v473, %v1082
      %v1088 = vlaneseq
      %v1089 = vshrl.u32 %v1088, 7
      %v1090 = vsub.s32 4, %v1089
      %v1091 = vrot.slane %v474, %v1090
      %v1092 = vadd.f32 %v1087, %v1091
      %v1093 = vsel %vm475, %v1092, 0.0
      %1094 = vadd.xlane.f32.xlu0 %v1093
      %v1095 = vpop.xlane.xlu0 %1094
      %v1096 = vmul.f32 %v1095, %v479
      %v1097 = vsub.f32 %v1092, %v1096
      %v1098 = vmul.f32 %v1097, %v1097
      %v1099 = vsel %vm475, %v1098, 0.0
      %1100 = vadd.xlane.f32.xlu0 %v1099
      %v1101 = vpop.xlane.xlu0 %1100
      %v1102 = vmul.f32 %v1101, %v479
      %v1103 = vadd.f32 %v1102, 1e-05
      %v1104 = vrsqrt.pop %v1103
      %v1105 = vmul.f32 %v1097, %v1104
      %v1106 = vlaneseq
      %v1107 = vshrl.u32 %v1106, 7
      %v1108 = vsub.s32 2, %v1107
      %v1109 = vrot.slane %v474, %v1108
      %v1110 = vmul.f32 %v1105, %v1109
      %v1111 = vlaneseq
      %v1112 = vshrl.u32 %v1111, 7
      %v1113 = vsub.s32 3, %v1112
      %v1114 = vrot.slane %v474, %v1113
      %v1115 = vadd.f32 %v1110, %v1114
      %v1116 = vpack.c.bf16 %v1115, %v1115
      %v1117 = vld [vmem:[%s452] sm:$0xf]
      %v1118 = vld [vmem:[%s452 + $0x4] sm:$0xf]
      %v1119 = vld [vmem:[%s452 + $0x8] sm:$0xf]
      %v1120 = vld [vmem:[%s452 + $0xc] sm:$0xf]
      %v1121 = vld [vmem:[%s455] sm:$0x1]
      %v1123 = vlaneseq
      %v1124 = vshrl.u32 %v1123, 7
      %v1125 = vsub.s32 0, %v1124
      %v1126 = vrot.slane %v1121, %v1125
      %v1132 = vunpack.c.l.b16 %v1117
      %v1133 = vunpack.c.l.b16 %v1118
      %v1134 = vunpack.c.l.b16 %v1119
      %v1135 = vunpack.c.l.b16 %v1120
      %v1136 = vpack.c.b16 %v1133, %v1132
      %v1137 = vpack.c.b16 %v1135, %v1134
      %v1141 = vsel %vm475, %v1116, 0
      %1143 = vmatprep.subr.bf16.mxu0 0
      %1144 = vmatpush1.bf16.msra.mxu0 %v1136
      %1145 = vmatprep.subr.bf16.mxu0 0
      %1146 = vmatpush1.bf16.msra.mxu0 %v1137
      %1147 = vmatprep.subr.bf16.mxu0 0
      %1148 = vmatpush1.bf16.msra.mxu0 0
      %1149 = vmatprep.subr.bf16.mxu0 0
      %1150 = vmatpush1.bf16.msra.mxu0 0
      %1151 = vmatprep.subr.bf16.mxu0 0
      %1152 = vmatpush1.bf16.msra.mxu0 0
      %1153 = vmatprep.subr.bf16.mxu0 0
      %1154 = vmatpush1.bf16.msra.mxu0 0
      %1155 = vmatprep.subr.bf16.mxu0 0
      %1156 = vmatpush1.bf16.msra.mxu0 0
      %1157 = vmatprep.subr.bf16.mxu0 0
      %1158 = vmatpush1.bf16.msra.mxu0 0
      %1159 = vmatprep.subr.bf16.mxu0 0
      %1160 = vmatpush1.bf16.msra.mxu0 0
      %1161 = vmatprep.subr.bf16.mxu0 0
      %1162 = vmatpush1.bf16.msra.mxu0 0
      %1163 = vmatprep.subr.bf16.mxu0 0
      %1164 = vmatpush1.bf16.msra.mxu0 0
      %1165 = vmatprep.subr.bf16.mxu0 0
      %1166 = vmatpush1.bf16.msra.mxu0 0
      %1167 = vmatprep.subr.bf16.mxu0 0
      %1168 = vmatpush1.bf16.msra.mxu0 0
      %1169 = vmatprep.subr.bf16.mxu0 0
      %1170 = vmatpush1.bf16.msra.mxu0 0
      %1171 = vmatprep.subr.bf16.mxu0 0
      %1172 = vmatpush1.bf16.msra.mxu0 0
      %1173 = vmatprep.subr.bf16.mxu0 0
      %1174 = vmatpush1.bf16.msra.mxu0 0
      %1175 = vmatprep.mubr.bf16.mxu0 0
      %1176 = vmatmul.mubr.bf16.gmra.mrb[0].mxu0 %v1141
      %v1177 = vpop.f32.mrb[0].mxu0
      %v1178 = vadd.f32 %v1126, %v1177
      %v1179 = vpop.f32.mrb[0].mxu0
      %v1180 = vpop.f32.mrb[0].mxu0
      %v1181 = vpop.f32.mrb[0].mxu0
      %1182 = vdwg.mxu0
      %v1183 = vmul.f32 %v1178, 0.5
      %v1184 = vmul.f32 %v1178, 0.044715
      %v1185 = vmul.f32 %v1184, %v1178
      %v1186 = vmul.f32 %v1185, %v1178
      %v1187 = vadd.f32 %v1178, %v1186
      %v1188 = vmul.f32 %v1187, 0.7978845
      %v1189 = vtanh.pop %v1188
      %v1190 = vadd.f32 %v1189, 1.0
      %v1191 = vmul.f32 %v1183, %v1190
      %v1192 = vpack.c.bf16 %v1191, %v1191
      %v1193 = vld [vmem:[%s460] sm:$0xf]
      %v1194 = vld [vmem:[%s460 + $0x4] sm:$0xf]
      %v1195 = vld [vmem:[%s460 + $0x8] sm:$0xf]
      %v1196 = vld [vmem:[%s460 + $0xc] sm:$0xf]
      %v1197 = vld [vmem:[%s460 + $0x10] sm:$0xf]
      %v1198 = vld [vmem:[%s460 + $0x14] sm:$0xf]
      %v1199 = vld [vmem:[%s460 + $0x18] sm:$0xf]
      %v1200 = vld [vmem:[%s460 + $0x1c] sm:$0xf]
      %v1201 = vld [vmem:[%s460 + $0x20] sm:$0xf]
      %v1202 = vld [vmem:[%s460 + $0x24] sm:$0xf]
      %v1203 = vld [vmem:[%s460 + $0x28] sm:$0xf]
      %v1204 = vld [vmem:[%s460 + $0x2c] sm:$0xf]
      %v1205 = vld [vmem:[%s460 + $0x30] sm:$0xf]
      %v1206 = vld [vmem:[%s460 + $0x34] sm:$0xf]
      %v1207 = vld [vmem:[%s460 + $0x38] sm:$0xf]
      %v1208 = vld [vmem:[%s460 + $0x3c] sm:$0xf]
      %v1225 = vunpack.c.l.b16 %v1193
      %v1226 = vunpack.c.l.b16 %v1194
      %v1227 = vunpack.c.l.b16 %v1195
      %v1228 = vunpack.c.l.b16 %v1196
      %v1229 = vunpack.c.l.b16 %v1197
      %v1230 = vunpack.c.l.b16 %v1198
      %v1231 = vunpack.c.l.b16 %v1199
      %v1232 = vunpack.c.l.b16 %v1200
      %v1233 = vunpack.c.l.b16 %v1201
      %v1234 = vunpack.c.l.b16 %v1202
      %v1235 = vunpack.c.l.b16 %v1203
      %v1236 = vunpack.c.l.b16 %v1204
      %v1237 = vunpack.c.l.b16 %v1205
      %v1238 = vunpack.c.l.b16 %v1206
      %v1239 = vunpack.c.l.b16 %v1207
      %v1240 = vunpack.c.l.b16 %v1208
      %v1241 = vpack.c.b16 %v1226, %v1225
      %v1242 = vpack.c.b16 %v1228, %v1227
      %v1243 = vpack.c.b16 %v1230, %v1229
      %v1244 = vpack.c.b16 %v1232, %v1231
      %v1245 = vpack.c.b16 %v1234, %v1233
      %v1246 = vpack.c.b16 %v1236, %v1235
      %v1247 = vpack.c.b16 %v1238, %v1237
      %v1248 = vpack.c.b16 %v1240, %v1239
      %1257 = vmatprep.subr.bf16.mxu0 0
      %1258 = vmatpush1.bf16.msra.mxu0 %v1241
      %1259 = vmatprep.subr.bf16.mxu0 0
      %1260 = vmatpush1.bf16.msra.mxu0 %v1242
      %1261 = vmatprep.subr.bf16.mxu0 0
      %1262 = vmatpush1.bf16.msra.mxu0 %v1243
      %1263 = vmatprep.subr.bf16.mxu0 0
      %1264 = vmatpush1.bf16.msra.mxu0 %v1244
      %1265 = vmatprep.subr.bf16.mxu0 0
      %1266 = vmatpush1.bf16.msra.mxu0 %v1245
      %1267 = vmatprep.subr.bf16.mxu0 0
      %1268 = vmatpush1.bf16.msra.mxu0 %v1246
      %1269 = vmatprep.subr.bf16.mxu0 0
      %1270 = vmatpush1.bf16.msra.mxu0 %v1247
      %1271 = vmatprep.subr.bf16.mxu0 0
      %1272 = vmatpush1.bf16.msra.mxu0 %v1248
      %1273 = vmatprep.subr.bf16.mxu0 0
      %1274 = vmatpush1.bf16.msra.mxu0 0
      %1275 = vmatprep.subr.bf16.mxu0 0
      %1276 = vmatpush1.bf16.msra.mxu0 0
      %1277 = vmatprep.subr.bf16.mxu0 0
      %1278 = vmatpush1.bf16.msra.mxu0 0
      %1279 = vmatprep.subr.bf16.mxu0 0
      %1280 = vmatpush1.bf16.msra.mxu0 0
      %1281 = vmatprep.subr.bf16.mxu0 0
      %1282 = vmatpush1.bf16.msra.mxu0 0
      %1283 = vmatprep.subr.bf16.mxu0 0
      %1284 = vmatpush1.bf16.msra.mxu0 0
      %1285 = vmatprep.subr.bf16.mxu0 0
      %1286 = vmatpush1.bf16.msra.mxu0 0
      %1287 = vmatprep.subr.bf16.mxu0 0
      %1288 = vmatpush1.bf16.msra.mxu0 0
      %1289 = vmatprep.mubr.bf16.mxu0 0
      %1290 = vmatmul.mubr.bf16.gmra.mrb[0].mxu0 %v1192
      %v1291 = vpop.f32.mrb[0].mxu0
      %v1292 = vadd.f32 0.0, %v1291
      %v1293 = vpop.f32.mrb[0].mxu0
      %v1294 = vpop.f32.mrb[0].mxu0
      %v1295 = vpop.f32.mrb[0].mxu0
      %1296 = vdwg.mxu0
      %v1297 = vadd.f32 %v1092, %v1292
      %v1298 = vlaneseq
      %v1299 = vshrl.u32 %v1298, 7
      %v1300 = vsub.s32 5, %v1299
      %v1301 = vrot.slane %v474, %v1300
      %v1302 = vadd.f32 %v1297, %v1301
      %1303 = vst.msk [vmem:[#allocation2] sm:$0xff] %vm475, %v1302
      %p1304 = scmp.eq.s32.totalorder %s25, 1
      // Predicated region
      $region61: #{transformer_with_value_head_forward.2} parent=55 // pred_check
        %p1305 = pneg %p1304
      $region62: #{transformer_with_value_head_forward.2} parent=55 // pred_check_branch
        %1307 = sbr.rel (%p1305) target = $region64
      $region63: #{transformer_with_value_head_forward.2} parent=55 // pred_region
        %1308 = vst.msk [vmem:[%s464] sm:$0xff] %vm475, %v1302
      $region64: #{transformer_with_value_head_forward.2} parent=55 // pred_fallthru
        _
      %p1309 = scmp.lt.s32.totalorder %s24, 1
      %s1310 = scalar_select %p1309, %s24, 1
      %s1311 = smul.addr %s1310, 8
      %s1312 = scalar_lea.vmem %s9, %s1311
      // Predicated region
      $region65: #{transformer_with_value_head_forward.2} parent=55 // pred_check
        %p1313 = pneg %p279
      $region66: #{transformer_with_value_head_forward.2} parent=55 // pred_check_branch
        %1315 = sbr.rel (%p1313) target = $region68
      $region67: #{transformer_with_value_head_forward.2} parent=55 // pred_region
        _
      $region68: #{transformer_with_value_head_forward.2} parent=55 // pred_fallthru
        _
    $region56: #{transformer_with_value_head_forward.2} parent=5 // pred_fallthru
      _
    %p1316 = scmp.le.s32.totalorder 2, %s15
    // Predicated region
    $region69: #{transformer_with_value_head_forward.2} parent=5 // pred_check
      %p1317 = pneg %p1316
    $region70: #{transformer_with_value_head_forward.2} parent=5 // pred_check_branch
      %1319 = sbr.rel (%p1317) target = $region72
    $region71: #{transformer_with_value_head_forward.2} parent=5 // pred_region
      %s1320 = ssub.s32 %s15, 2
      // Predicated region
      $region73: #{transformer_with_value_head_forward.2} parent=71 // pred_check
        %p1321 = pneg %p285
      $region74: #{transformer_with_value_head_forward.2} parent=71 // pred_check_branch
        %1323 = sbr.rel (%p1321) target = $region76
      $region75: #{transformer_with_value_head_forward.2} parent=71 // pred_region
        %p1324 = scmp.lt.s32.totalorder %s26, 1
        %s1325 = scalar_select %p1324, %s26, 1
        %s1326 = smul.addr %s1325, 8
        %s1327 = scalar_lea.vmem %s9, %s1326
      $region76: #{transformer_with_value_head_forward.2} parent=71 // pred_fallthru
        _
    $region72: #{transformer_with_value_head_forward.2} parent=5 // pred_fallthru
      _
  $region6: #{transformer_with_value_head_forward.2} parent=0 // loop_footer
    %s19 = sadd.s32 1, %s15
  $region7: #{transformer_with_value_head_forward.2} parent=0 // loop_footer_branch
    %14 = sbr.rel target = $region3
  $region8: #{transformer_with_value_head_forward.2} parent=0 // loop_exit
    _

</llo_original>
